<compile_context>
chip_gen: v7x
topology: tpu7x:2x2x1
jax: 0.10.0
libtpu: 0.0.40
codegen_flags: <defaults>
</compile_context>

<pallas_src>
import functools

import jax
import jax.numpy as jnp
from jax.experimental import pallas as pl
from jax.experimental.pallas import tpu as pltpu


K_FEATURES = 12800   # Linear in_features
N_CLASSES = 10       # Linear out_features (logical)
N_PAD = 128          # lane-dense padded output width
_NEG_BIG = -1e30     # finite stand-in for -inf in the padded bias columns


def linear_logsoftmax_kernel(x_ref, w_ref, b_ref, o_ref, acc_ref, *, tk):
    k = pl.program_id(1)
    nk = pl.num_programs(1)

    @pl.when(k == 0)
    def _():
        acc_ref[...] = jnp.zeros_like(acc_ref)

    # (tm, tk) @ (tk, 128) on the MXU in bf16, accumulated in f32.
    k0 = pl.multiple_of(k * tk, tk)
    w_chunk = w_ref[pl.ds(k0, tk), :]                 # resident bf16 weights
    x_chunk = x_ref[...].astype(jnp.bfloat16)         # streamed x chunk
    acc_ref[...] += jnp.dot(x_chunk, w_chunk,
                            preferred_element_type=jnp.float32)

    @pl.when(k == nk - 1)
    def _():
        # Bias already carries -1e30 in the 118 padded columns and the padded
        # W columns are zero, so padded logits cannot affect max / exp-sum.
        z = acc_ref[...] + b_ref[...]
        m = jnp.max(z, axis=-1, keepdims=True)
        shifted = z - m
        lse = jnp.log(jnp.sum(jnp.exp(shifted), axis=-1, keepdims=True))
        o_ref[...] = (shifted - lse).astype(o_ref.dtype)


def prepare_params(w, b):
    """One-time (init) padding/cast of Linear params. w: (10, 12800), b: (10,)."""
    w_t = jnp.asarray(w).T                                            # (K, 10)
    k, n = w_t.shape
    w_pad = jnp.zeros((k, N_PAD), jnp.bfloat16).at[:, :n].set(
        w_t.astype(jnp.bfloat16))
    b_pad = jnp.full((1, N_PAD), _NEG_BIG, jnp.float32).at[0, :n].set(
        jnp.asarray(b, jnp.float32))
    return w_pad, b_pad


def _pick_tm(batch, block_m):
    if batch <= 8:
        return batch                      # single full-dim tile (always legal)
    # Aim for >= 2 batch tiles (v7x has 2 TensorCores); tm multiple of 8.
    tm = ((pl.cdiv(batch, 2) + 7) // 8) * 8
    return min(tm, block_m)


@functools.partial(jax.jit, static_argnames=("block_m", "block_k"))
def derived_model9_forward(x, w_pad, b_pad, *, block_m=256, block_k=3200):
    """x: (B, 12800), w_pad: (12800, 128) bf16, b_pad: (1, 128) f32 -> (B, 10) f32."""
    B, K = x.shape
    assert K == w_pad.shape[0] and K % block_k == 0

    tm = _pick_tm(B, block_m)
    grid = (pl.cdiv(B, tm), K // block_k)

    cost = pl.CostEstimate(
        flops=2 * B * K * N_PAD,
        transcendentals=B * N_PAD,
        bytes_accessed=x.size * x.dtype.itemsize
        + w_pad.size * w_pad.dtype.itemsize
        + B * N_PAD * 4,
    )

    out_padded = pl.pallas_call(
        functools.partial(linear_logsoftmax_kernel, tk=block_k),
        out_shape=jax.ShapeDtypeStruct((B, N_PAD), jnp.float32),
        grid=grid,
        in_specs=[
            pl.BlockSpec((tm, block_k), lambda i, k: (i, k)),   # x: streamed chunks
            pl.BlockSpec((K, N_PAD), lambda i, k: (0, 0)),      # W: resident, DMA'd once
            pl.BlockSpec((1, N_PAD), lambda i, k: (0, 0)),      # b: resident
        ],
        out_specs=pl.BlockSpec((tm, N_PAD), lambda i, k: (i, 0)),
        scratch_shapes=[pltpu.VMEM((tm, N_PAD), jnp.float32)],
        compiler_params=pltpu.CompilerParams(
            dimension_semantics=("parallel", "arbitrary"),
            vmem_limit_bytes=32 * 1024 * 1024,
        ),
        cost_estimate=cost,
    )(x, w_pad, b_pad)

    # Drop the 118 padded logit columns; ragged batch rows were never written.
    return out_padded[:, :N_CLASSES]


if __name__ == "__main__":
    key = jax.random.PRNGKey(0)
    k_x, k_w, k_b = jax.random.split(key, 3)

    B, K, N = 8, K_FEATURES, N_CLASSES

    # Deterministic synthetic parameters (PyTorch nn.Linear-style init scale).
    bound = 1.0 / (K ** 0.5)
    w = jax.random.uniform(k_w, (N, K), jnp.float32, -bound, bound)   # (out, in)
    b = jax.random.uniform(k_b, (N,), jnp.float32, -bound, bound)
    x = jax.random.normal(k_x, (B, K), jnp.float32)

    w_pad, b_pad = prepare_params(w, b)      # once, at "model init"

    out = derived_model9_forward(x, w_pad, b_pad)
    out = jax.block_until_ready(out)

    # Reference: f32 Linear + LogSoftmax. Kernel matmul is bf16 with f32
    # accumulation, so allow a small absolute tolerance on the log-probs.
    ref = jax.nn.log_softmax(x @ w.T + b, axis=1)
    assert out.shape == (B, N)
    assert bool(jnp.all(jnp.isfinite(out)))
    assert jnp.allclose(out, ref, atol=3e-2, rtol=3e-2), float(
        jnp.max(jnp.abs(out - ref)))

    print("KERNEL_OK")
</pallas_src>

<mosaic_0001>
module attributes {stable_mosaic.version = 11 : i64} {
  func.func @linear_logsoftmax_kernel(%arg0: i32, %arg1: i32, %arg2: memref<8x3200xf32, #tpu.memory_space<vmem>>, %arg3: memref<12800x128xbf16, #tpu.memory_space<vmem>>, %arg4: memref<1x128xf32, #tpu.memory_space<vmem>>, %arg5: memref<8x128xf32, #tpu.memory_space<vmem>>, %arg6: memref<8x128xf32, #tpu.memory_space<vmem>>) attributes {dimension_semantics = [#tpu.dimension_semantics<parallel>, #tpu.dimension_semantics<arbitrary>], iteration_bounds = array<i64: 1, 4>, scalar_prefetch = 0 : i64, scratch_operands = 1 : i64, tpu.core_type = #tpu.core_type<tc>, window_params = [{transform_indices = @transform_0, window_bounds = array<i64: 8, 3200>}, {pipeline_mode = #tpu.pipeline_mode<synchronous>, transform_indices = @transform_1, window_bounds = array<i64: 12800, 128>}, {pipeline_mode = #tpu.pipeline_mode<synchronous>, transform_indices = @transform_2, window_bounds = array<i64: 1, 128>}, {transform_indices = @transform_3, window_bounds = array<i64: 8, 128>}]} {
    %c0_i32 = arith.constant 0 : i32
    %0 = arith.cmpi eq, %arg1, %c0_i32 : i32
    %1 = arith.extui %0 : i1 to i32
    %c0_i32_0 = arith.constant 0 : i32
    %2 = arith.cmpi ne, %1, %c0_i32_0 : i32
    scf.if %2 {
      %cst_8 = arith.constant 0.000000e+00 : f32
      %16 = vector.broadcast %cst_8 : f32 to vector<8x128xf32>
      %c0_9 = arith.constant 0 : index
      %c0_10 = arith.constant 0 : index
      %17 = vector.load %arg6[%c0_9, %c0_10] : memref<8x128xf32, #tpu.memory_space<vmem>>, vector<8x128xf32>
      tpu.vector_store %arg6[%c0_9, %c0_10], %16 {strides = array<i32>} : memref<8x128xf32, #tpu.memory_space<vmem>>, vector<8x128xf32>,
    } else {
    }
    %c3200_i32 = arith.constant 3200 : i32
    %3 = arith.muli %arg1, %c3200_i32 : i32
    %4 = tpu.assume_multiple %3, 3200 : i32
    %5 = arith.index_cast %4 : i32 to index
    %c0 = arith.constant 0 : index
    %6 = vector.load %arg3[%5, %c0] : memref<12800x128xbf16, #tpu.memory_space<vmem>>, vector<3200x128xbf16>
    %c0_1 = arith.constant 0 : index
    %c0_2 = arith.constant 0 : index
    %7 = vector.load %arg2[%c0_1, %c0_2] : memref<8x3200xf32, #tpu.memory_space<vmem>>, vector<8x3200xf32>
    %8 = arith.truncf %7 : vector<8x3200xf32> to vector<8x3200xbf16>
    %c0_3 = arith.constant 0 : index
    %c0_4 = arith.constant 0 : index
    %9 = vector.load %arg6[%c0_3, %c0_4] : memref<8x128xf32, #tpu.memory_space<vmem>>, vector<8x128xf32>
    %cst = arith.constant dense<0.000000e+00> : vector<8x128xf32>
    %10 = tpu.matmul %8, %6, %cst {dimension_numbers = #tpu.dot_dimension_numbers<[1], [0], [0], [1], [0, 0, 1, 1], [], []>} : vector<8x3200xbf16>, vector<3200x128xbf16>, vector<8x128xf32> -> vector<8x128xf32>
    %11 = arith.addf %9, %10 : vector<8x128xf32>
    %c0_5 = arith.constant 0 : index
    %c0_6 = arith.constant 0 : index
    %12 = vector.load %arg6[%c0_5, %c0_6] : memref<8x128xf32, #tpu.memory_space<vmem>>, vector<8x128xf32>
    tpu.vector_store %arg6[%c0_5, %c0_6], %11 {strides = array<i32>} : memref<8x128xf32, #tpu.memory_space<vmem>>, vector<8x128xf32>,
    %c3_i32 = arith.constant 3 : i32
    %13 = arith.cmpi eq, %arg1, %c3_i32 : i32
    %14 = arith.extui %13 : i1 to i32
    %c0_i32_7 = arith.constant 0 : i32
    %15 = arith.cmpi ne, %14, %c0_i32_7 : i32
    scf.if %15 {
      %c0_8 = arith.constant 0 : index
      %c0_9 = arith.constant 0 : index
      %16 = vector.load %arg6[%c0_8, %c0_9] : memref<8x128xf32, #tpu.memory_space<vmem>>, vector<8x128xf32>
      %c0_10 = arith.constant 0 : index
      %c0_11 = arith.constant 0 : index
      %17 = vector.load %arg4[%c0_10, %c0_11] : memref<1x128xf32, #tpu.memory_space<vmem>>, vector<1x128xf32>
      %18 = vector.broadcast %17 : vector<1x128xf32> to vector<8x128xf32>
      %19 = arith.addf %16, %18 : vector<8x128xf32>
      %cst_12 = arith.constant dense<0xFF800000> : vector<8xf32>
      %20 = vector.multi_reduction <maximumf>, %19, %cst_12 [1] : vector<8x128xf32> to vector<8xf32>
      %21 = vector.shape_cast %20 : vector<8xf32> to vector<8x1xf32>
      %22 = vector.broadcast %21 : vector<8x1xf32> to vector<8x128xf32>
      %23 = arith.subf %19, %22 : vector<8x128xf32>
      %24 = math.exp %23 : vector<8x128xf32>
      %cst_13 = arith.constant dense<0.000000e+00> : vector<8xf32>
      %25 = vector.multi_reduction <add>, %24, %cst_13 [1] : vector<8x128xf32> to vector<8xf32>
      %26 = vector.shape_cast %25 : vector<8xf32> to vector<8x1xf32>
      %27 = math.log %26 : vector<8x1xf32>
      %28 = vector.broadcast %27 : vector<8x1xf32> to vector<8x128xf32>
      %29 = arith.subf %23, %28 : vector<8x128xf32>
      %c0_14 = arith.constant 0 : index
      %c0_15 = arith.constant 0 : index
      %30 = vector.load %arg5[%c0_14, %c0_15] : memref<8x128xf32, #tpu.memory_space<vmem>>, vector<8x128xf32>
      tpu.vector_store %arg5[%c0_14, %c0_15], %29 {strides = array<i32>} : memref<8x128xf32, #tpu.memory_space<vmem>>, vector<8x128xf32>,
    } else {
    }
    return
  }
  func.func @transform_0(%arg0: i32, %arg1: i32) -> (i32, i32) {
    %c0_i32 = arith.constant 0 : i32
    return %arg0, %arg1 : i32, i32
  }
  func.func @transform_1(%arg0: i32, %arg1: i32) -> (i32, i32) {
    %c0_i32 = arith.constant 0 : i32
    %c0_i32_0 = arith.constant 0 : i32
    %c0_i32_1 = arith.constant 0 : i32
    return %c0_i32, %c0_i32_0 : i32, i32
  }
  func.func @transform_2(%arg0: i32, %arg1: i32) -> (i32, i32) {
    %c0_i32 = arith.constant 0 : i32
    %c0_i32_0 = arith.constant 0 : i32
    %c0_i32_1 = arith.constant 0 : i32
    return %c0_i32, %c0_i32_0 : i32, i32
  }
  func.func @transform_3(%arg0: i32, %arg1: i32) -> (i32, i32) {
    %c0_i32 = arith.constant 0 : i32
    %c0_i32_0 = arith.constant 0 : i32
    return %arg0, %c0_i32 : i32, i32
  }
}

</mosaic_0001>

<llo_original>
// kernel: derived_model9_forward.1
$region0: #{derived_model9_forward.1}
  #allocation0 [shape = 'u32[]', space=smem, size = 0x4, offset = 0x4, fixed_abs, tag = 'smem constant byte address 0x4 - core index']
  #allocation1 [shape = 'u32[144,128]{1,0:T(1,128)}', space=vmem, size = 0x12000, scoped, tag = 'internal scratch']
  #allocation2 [shape = 'f32[8,128]{1,0:T(8,128)}', space=vmem, size = 0x1000, scoped, tag = 'scratch operand']
  %s0 = inlined_call_operand.hbm [shape: f32[8,12800], index: 0, kind: input, shape index: {}]
  %s1 = inlined_call_operand.hbm [shape: bf16[12800,128], index: 1, kind: input, shape index: {}]
  %s2 = inlined_call_operand.hbm [shape: f32[1,128], index: 2, kind: input, shape index: {}]
  %s3 = inlined_call_operand.hbm [shape: f32[8,128], index: 3, kind: output, shape index: {}]
  %s4 = sld [smem:[#allocation0]]
  $region65: #{derived_model9_forward.1} parent=0
    _
  %s6 = ssub.s32 1, %s4
  %s7 = scalar_select 0, %s6, %s4
  $region1: #{derived_model9_forward.1} parent=0
    #allocation3 [shape = 'u8[204800]{0}', space=vmem, size = 0x32000, scoped, tag = 'input window, operand 0']
    #allocation4 [shape = 's32[2]{0}', space=sflag, size = 0x8, scoped, tag = 'scoped memory for derived_model9_forward.1']
    #allocation5 [shape = 's32[2]{0}', space=sflag, size = 0x8, scoped, tag = 'scoped memory for derived_model9_forward.1']
    #allocation6 [shape = 'u8[3276800]{0}', space=vmem, size = 0x320000, scoped, tag = 'input window, operand 1, single buffered']
    #allocation7 [shape = 's32[1]{0}', space=sflag, size = 0x4, scoped, tag = 'scoped memory for derived_model9_forward.1']
    #allocation8 [shape = 'u8[512]{0}', space=vmem, size = 0x400, scoped, tag = 'input window, operand 2, single buffered']
    #allocation9 [shape = 'u8[4096]{0}', space=vmem, size = 0x1000, scoped, tag = 'output window, operand 0, single buffered']
    %8 = vsyncpa [#allocation4], 0
    %s9 = scalar_lea.sflag [#allocation4], 1
    %10 = vsyncpa %s9, 0
    %11 = vsyncpa [#allocation7], 0
    %12 = vsyncpa [#allocation5], 0
    loop: start=0, step=1, limit=6
    $region2: #{derived_model9_forward.1} parent=1 // loop_pre_header
      _
    $region3: #{derived_model9_forward.1} parent=1 // loop_header
      %s14 = sphi 0, %s18
      %p15 = scmp.ge.s32.totalorder %s14, 6
      %s21 = sphi 0, %s33
      %s22 = sphi 0, %s29
      %s23 = sphi 0, %s21
      %s24 = sphi 0, %s22
      %s25 = sphi 0, %s23
      %s26 = sphi 0, %s24
      %s38 = sphi 0, %s40
      %s41 = sphi 0, %s38
      %s42 = sphi 0, %s41
      %s58 = sphi 0, %s42
      %s62 = sphi 0, %s62
      %s64 = sphi 0, %s62
      %s65 = sphi 0, %s64
      %s79 = sphi 0, %s65
      %s83 = sphi 0, %s83
      %s85 = sphi 0, %s83
      %s86 = sphi 0, %s85
      %s100 = sphi 0, %s86
      %s106 = sphi 0, %s108
      %s109 = sphi 0, %s106
      %s110 = sphi 0, %s109
      %s126 = sphi 0, %s110
    $region4: #{derived_model9_forward.1} parent=1 // loop_header_branch
      %17 = sbr.rel (%p15) target = $region8
    $region5: #{derived_model9_forward.1} parent=1 // loop_body
      %s19 = ssub.s32 %s14, 1
      %s20 = ssub.s32 %s14, 2
      %s27 = sadd.s32 1, %s22
      %p28 = scmp.ge.s32.totalorder %s27, 4
      %s29 = scalar_select %p28, 0, %s27
      %s30 = sadd.s32 1, %s21
      %s31 = scalar_select %p28, %s30, %s21
      %p32 = scmp.ge.s32.totalorder %s31, 1
      %s33 = scalar_select %p32, 0, %s31
      %s34 = ssub.s32 %s21, %s33
      %s35 = ssub.s32 %s22, %s29
      %s36 = sor.u32 %s34, %s35
      %p37 = scmp.eq.s32.totalorder %s36, 0
      %s39 = sadd.s32 %s38, 1
      %s40 = scalar_select %p37, %s38, %s39
      %p43 = pneg %p37
      %p44 = scmp.eq.s32.totalorder %s14, 3
      %p45 = por %p43, %p44
      %p46 = scmp.ne.s32.totalorder %s38, %s41
      %p47 = scmp.eq.s32.totalorder %s14, 0
      %p48 = por %p46, %p47
      %p49 = scmp.ne.s32.totalorder %s38, %s41
      %p50 = scmp.eq.s32.totalorder %s19, 3
      %p51 = por %p49, %p50
      %p52 = scmp.ne.s32.totalorder %s41, %s42
      %p53 = scmp.eq.s32.totalorder %s19, 0
      %p54 = por %p52, %p53
      %p55 = scmp.ne.s32.totalorder %s41, %s42
      %p56 = scmp.eq.s32.totalorder %s20, 3
      %p57 = por %p55, %p56
      %p59 = scmp.ne.s32.totalorder %s42, %s58
      %p60 = scmp.eq.s32.totalorder %s20, 0
      %p61 = por %p59, %p60
      %s63 = sadd.s32 %s62, 1
      %p66 = scmp.eq.s32.totalorder %s14, 3
      %p67 = scmp.ne.s32.totalorder %s62, %s64
      %p68 = scmp.eq.s32.totalorder %s14, 0
      %p69 = por %p67, %p68
      %p70 = scmp.ne.s32.totalorder %s62, %s64
      %p71 = scmp.eq.s32.totalorder %s19, 3
      %p72 = por %p70, %p71
      %p73 = scmp.ne.s32.totalorder %s64, %s65
      %p74 = scmp.eq.s32.totalorder %s19, 0
      %p75 = por %p73, %p74
      %p76 = scmp.ne.s32.totalorder %s64, %s65
      %p77 = scmp.eq.s32.totalorder %s20, 3
      %p78 = por %p76, %p77
      %p80 = scmp.ne.s32.totalorder %s65, %s79
      %p81 = scmp.eq.s32.totalorder %s20, 0
      %p82 = por %p80, %p81
      %s84 = sadd.s32 %s83, 1
      %p87 = scmp.eq.s32.totalorder %s14, 3
      %p88 = scmp.ne.s32.totalorder %s83, %s85
      %p89 = scmp.eq.s32.totalorder %s14, 0
      %p90 = por %p88, %p89
      %p91 = scmp.ne.s32.totalorder %s83, %s85
      %p92 = scmp.eq.s32.totalorder %s19, 3
      %p93 = por %p91, %p92
      %p94 = scmp.ne.s32.totalorder %s85, %s86
      %p95 = scmp.eq.s32.totalorder %s19, 0
      %p96 = por %p94, %p95
      %p97 = scmp.ne.s32.totalorder %s85, %s86
      %p98 = scmp.eq.s32.totalorder %s20, 3
      %p99 = por %p97, %p98
      %p101 = scmp.ne.s32.totalorder %s86, %s100
      %p102 = scmp.eq.s32.totalorder %s20, 0
      %p103 = por %p101, %p102
      %s104 = ssub.s32 %s21, %s33
      %p105 = scmp.eq.s32.totalorder %s104, 0
      %s107 = sadd.s32 %s106, 1
      %s108 = scalar_select %p105, %s106, %s107
      %p111 = pneg %p105
      %p112 = scmp.eq.s32.totalorder %s14, 3
      %p113 = por %p111, %p112
      %p114 = scmp.ne.s32.totalorder %s106, %s109
      %p115 = scmp.eq.s32.totalorder %s14, 0
      %p116 = por %p114, %p115
      %p117 = scmp.ne.s32.totalorder %s106, %s109
      %p118 = scmp.eq.s32.totalorder %s19, 3
      %p119 = por %p117, %p118
      %p120 = scmp.ne.s32.totalorder %s109, %s110
      %p121 = scmp.eq.s32.totalorder %s19, 0
      %p122 = por %p120, %p121
      %p123 = scmp.ne.s32.totalorder %s109, %s110
      %p124 = scmp.eq.s32.totalorder %s20, 3
      %p125 = por %p123, %p124
      %p127 = scmp.ne.s32.totalorder %s110, %s126
      %p128 = scmp.eq.s32.totalorder %s20, 0
      %p129 = por %p127, %p128
      %p130 = scmp.le.s32.totalorder 1, %s14
      %p131 = scmp.lt.s32.totalorder %s14, 5
      %p132 = pnand %p130, %p131
      %p133 = pneg %p132
      // Predicated region
      $region9: #{derived_model9_forward.1} parent=5 // pred_check
        _
      $region10: #{derived_model9_forward.1} parent=5 // pred_check_branch
        %135 = sbr.rel (%p132) target = $region12
      $region11: #{derived_model9_forward.1} parent=5 // pred_region
        %s136 = ssub.s32 %s14, 1
        // Predicated region
        $region13: #{derived_model9_forward.1} parent=11 // pred_check
          %p137 = pneg %p75
        $region14: #{derived_model9_forward.1} parent=11 // pred_check_branch
          %139 = sbr.rel (%p137) target = $region16
        $region15: #{derived_model9_forward.1} parent=11 // pred_region
          %s141 = ssub.s32 102400, 102400
          %142 = vsyncadd [#allocation7], %s141
          %s143 = sshll.u32 [#allocation6], 4
          %s144 = int_to_ptr.vmem [resolvable:$true] %s143
          %149 = dma.hbm_to_vmem [thread:$0]  %s1, 102400, %s144, [#allocation7], 64, 64, 4
        $region16: #{derived_model9_forward.1} parent=11 // pred_fallthru
          _
        // Predicated region
        $region17: #{derived_model9_forward.1} parent=11 // pred_check
          %p150 = pneg %p96
        $region18: #{derived_model9_forward.1} parent=11 // pred_check_branch
          %152 = sbr.rel (%p150) target = $region20
        $region19: #{derived_model9_forward.1} parent=11 // pred_region
          %s154 = ssub.s32 16, 16
          %155 = vsyncadd [#allocation7], %s154
          %s157 = sshll.u32 [#allocation8], 4
          %s158 = int_to_ptr.vmem [resolvable:$true] %s157
          %160 = dma.hbm_to_vmem [thread:$0]  %s2, 16, %s158, [#allocation7]
        $region20: #{derived_model9_forward.1} parent=11 // pred_fallthru
          _
      $region12: #{derived_model9_forward.1} parent=5 // pred_fallthru
        _
      %p161 = scmp.lt.s32.totalorder %s14, 4
      // Predicated region
      $region21: #{derived_model9_forward.1} parent=5 // pred_check
        %p162 = pneg %p161
      $region22: #{derived_model9_forward.1} parent=5 // pred_check_branch
        %164 = sbr.rel (%p162) target = $region24
      $region23: #{derived_model9_forward.1} parent=5 // pred_region
        // Predicated region
        $region25: #{derived_model9_forward.1} parent=23 // pred_check
          %p165 = pneg %p48
        $region26: #{derived_model9_forward.1} parent=23 // pred_check_branch
          %167 = sbr.rel (%p165) target = $region28
        $region27: #{derived_model9_forward.1} parent=23 // pred_region
          %s168 = sand.u32 %s38, 1
          %s169 = scalar_lea.sflag [#allocation4], %s168
          %s170 = sand.u32 %s38, 1
          %s171 = smul.addr %s170, 200
          %s172 = scalar_lea.vmem [#allocation3], %s171
          %s173 = smul.u32 25, %s22
          %s175 = ssub.s32 3200, 3200
          %176 = vsyncadd %s169, %s175
          %s177 = smul.addr %s21, 100
          %s178 = sadd.s32 %s173, %s177
          %s179 = smul.addr %s178, 128
          %s180 = scalar_lea.hbm %s0, %s179
          %s182 = sshll.u32 %s172, 4
          %s183 = int_to_ptr.vmem [resolvable:$true] %s182
          %185 = dma.hbm_to_vmem [thread:$0]  %s180, 3200, %s183, %s169
        $region28: #{derived_model9_forward.1} parent=23 // pred_fallthru
          _
      $region24: #{derived_model9_forward.1} parent=5 // pred_fallthru
        _
      %p186 = scmp.le.s32.totalorder 1, %s14
      %p187 = scmp.lt.s32.totalorder %s14, 5
      %p188 = pnand %p186, %p187
      %p189 = pneg %p188
      // Predicated region
      $region29: #{derived_model9_forward.1} parent=5 // pred_check
        _
      $region30: #{derived_model9_forward.1} parent=5 // pred_check_branch
        %191 = sbr.rel (%p188) target = $region32
      $region31: #{derived_model9_forward.1} parent=5 // pred_region
        %s192 = ssub.s32 %s14, 1
        %s193 = sand.u32 %s41, 1
        %s194 = scalar_lea.sflag [#allocation4], %s193
        %s195 = sand.u32 %s41, 1
        %s196 = smul.addr %s195, 200
        %s197 = scalar_lea.vmem [#allocation3], %s196
        // Predicated region
        $region33: #{derived_model9_forward.1} parent=31 // pred_check
          %p198 = pneg %p54
        $region34: #{derived_model9_forward.1} parent=31 // pred_check_branch
          %200 = sbr.rel (%p198) target = $region36
        $region35: #{derived_model9_forward.1} parent=31 // pred_region
          %201 = dma.done %s194, 3200
        $region36: #{derived_model9_forward.1} parent=31 // pred_fallthru
          _
        // Predicated region
        $region37: #{derived_model9_forward.1} parent=31 // pred_check
          %p202 = pneg %p75
        $region38: #{derived_model9_forward.1} parent=31 // pred_check_branch
          %204 = sbr.rel (%p202) target = $region40
        $region39: #{derived_model9_forward.1} parent=31 // pred_region
          %205 = dma.done [#allocation7], 102400
        $region40: #{derived_model9_forward.1} parent=31 // pred_fallthru
          _
        // Predicated region
        $region41: #{derived_model9_forward.1} parent=31 // pred_check
          %p206 = pneg %p96
        $region42: #{derived_model9_forward.1} parent=31 // pred_check_branch
          %208 = sbr.rel (%p206) target = $region44
        $region43: #{derived_model9_forward.1} parent=31 // pred_region
          %209 = dma.done [#allocation7], 16
        $region44: #{derived_model9_forward.1} parent=31 // pred_fallthru
          _
        %s210 = sand.u32 %s41, 1
        %s211 = scalar_lea.sflag [#allocation4], %s210
        %s212 = sand.u32 %s41, 1
        %s213 = smul.addr %s212, 200
        %s214 = scalar_lea.vmem [#allocation3], %s213
        %p215 = pneg %p54
        %p216 = pneg %p51
        %p217 = pneg %p75
        %p218 = pneg %p72
        %p219 = pneg %p96
        %p220 = pneg %p93
        %p221 = pneg %p122
        %p222 = pneg %p119
        %s223 = smul.u32 25, %s24
        %p225 = scmp.eq.s32.totalorder %s24, 0
        // Predicated region
        $region45: #{derived_model9_forward.1} parent=31 // pred_check
          %p226 = pneg %p225
        $region46: #{derived_model9_forward.1} parent=31 // pred_check_branch
          %228 = sbr.rel (%p226) target = $region48
        $region47: #{derived_model9_forward.1} parent=31 // pred_region
          %229 = vst [vmem:[#allocation2] sm:$0xff] 0.0
        $region48: #{derived_model9_forward.1} parent=31 // pred_fallthru
          _
        %s230 = smul.u32 %s24, 3200
        %s231 = sshra.s32 %s230, 3
        %s232 = sand.u32 %s230, 7
        %s233 = smul.addr %s231, 4
        %s234 = scalar_lea.vmem [#allocation6], %s233
        %v235 = vld [vmem:[%s234] sm:$0xf]
        %v236 = vld [vmem:[%s234 + $0x4] sm:$0xf]
        %v237 = vld [vmem:[%s234 + $0x8] sm:$0xf]
        %v238 = vld [vmem:[%s234 + $0xc] sm:$0xf]
        %v239 = vld [vmem:[%s234 + $0x10] sm:$0xf]
        %v240 = vld [vmem:[%s234 + $0x14] sm:$0xf]
        %v241 = vld [vmem:[%s234 + $0x18] sm:$0xf]
        %v242 = vld [vmem:[%s234 + $0x1c] sm:$0xf]
        %v243 = vld [vmem:[%s234 + $0x20] sm:$0xf]
        %v244 = vld [vmem:[%s234 + $0x24] sm:$0xf]
        %v245 = vld [vmem:[%s234 + $0x28] sm:$0xf]
        %v246 = vld [vmem:[%s234 + $0x2c] sm:$0xf]
        %v247 = vld [vmem:[%s234 + $0x30] sm:$0xf]
        %v248 = vld [vmem:[%s234 + $0x34] sm:$0xf]
        %v249 = vld [vmem:[%s234 + $0x38] sm:$0xf]
        %v250 = vld [vmem:[%s234 + $0x3c] sm:$0xf]
        %v251 = vld [vmem:[%s234 + $0x40] sm:$0xf]
        %v252 = vld [vmem:[%s234 + $0x44] sm:$0xf]
        %v253 = vld [vmem:[%s234 + $0x48] sm:$0xf]
        %v254 = vld [vmem:[%s234 + $0x4c] sm:$0xf]
        %v255 = vld [vmem:[%s234 + $0x50] sm:$0xf]
        %v256 = vld [vmem:[%s234 + $0x54] sm:$0xf]
        %v257 = vld [vmem:[%s234 + $0x58] sm:$0xf]
        %v258 = vld [vmem:[%s234 + $0x5c] sm:$0xf]
        %v259 = vld [vmem:[%s234 + $0x60] sm:$0xf]
        %v260 = vld [vmem:[%s234 + $0x64] sm:$0xf]
        %v261 = vld [vmem:[%s234 + $0x68] sm:$0xf]
        %v262 = vld [vmem:[%s234 + $0x6c] sm:$0xf]
        %v263 = vld [vmem:[%s234 + $0x70] sm:$0xf]
        %v264 = vld [vmem:[%s234 + $0x74] sm:$0xf]
        %v265 = vld [vmem:[%s234 + $0x78] sm:$0xf]
        %v266 = vld [vmem:[%s234 + $0x7c] sm:$0xf]
        %v267 = vld [vmem:[%s234 + $0x80] sm:$0xf]
        %v268 = vld [vmem:[%s234 + $0x84] sm:$0xf]
        %v269 = vld [vmem:[%s234 + $0x88] sm:$0xf]
        %v270 = vld [vmem:[%s234 + $0x8c] sm:$0xf]
        %v271 = vld [vmem:[%s234 + $0x90] sm:$0xf]
        %v272 = vld [vmem:[%s234 + $0x94] sm:$0xf]
        %v273 = vld [vmem:[%s234 + $0x98] sm:$0xf]
        %v274 = vld [vmem:[%s234 + $0x9c] sm:$0xf]
        %v275 = vld [vmem:[%s234 + $0xa0] sm:$0xf]
        %v276 = vld [vmem:[%s234 + $0xa4] sm:$0xf]
        %v277 = vld [vmem:[%s234 + $0xa8] sm:$0xf]
        %v278 = vld [vmem:[%s234 + $0xac] sm:$0xf]
        %v279 = vld [vmem:[%s234 + $0xb0] sm:$0xf]
        %v280 = vld [vmem:[%s234 + $0xb4] sm:$0xf]
        %v281 = vld [vmem:[%s234 + $0xb8] sm:$0xf]
        %v282 = vld [vmem:[%s234 + $0xbc] sm:$0xf]
        %v283 = vld [vmem:[%s234 + $0xc0] sm:$0xf]
        %v284 = vld [vmem:[%s234 + $0xc4] sm:$0xf]
        %v285 = vld [vmem:[%s234 + $0xc8] sm:$0xf]
        %v286 = vld [vmem:[%s234 + $0xcc] sm:$0xf]
        %v287 = vld [vmem:[%s234 + $0xd0] sm:$0xf]
        %v288 = vld [vmem:[%s234 + $0xd4] sm:$0xf]
        %v289 = vld [vmem:[%s234 + $0xd8] sm:$0xf]
        %v290 = vld [vmem:[%s234 + $0xdc] sm:$0xf]
        %v291 = vld [vmem:[%s234 + $0xe0] sm:$0xf]
        %v292 = vld [vmem:[%s234 + $0xe4] sm:$0xf]
        %v293 = vld [vmem:[%s234 + $0xe8] sm:$0xf]
        %v294 = vld [vmem:[%s234 + $0xec] sm:$0xf]
        %v295 = vld [vmem:[%s234 + $0xf0] sm:$0xf]
        %v296 = vld [vmem:[%s234 + $0xf4] sm:$0xf]
        %v297 = vld [vmem:[%s234 + $0xf8] sm:$0xf]
        %v298 = vld [vmem:[%s234 + $0xfc] sm:$0xf]
        %v299 = vld [vmem:[%s234 + $0x100] sm:$0xf]
        %v300 = vld [vmem:[%s234 + $0x104] sm:$0xf]
        %v301 = vld [vmem:[%s234 + $0x108] sm:$0xf]
        %v302 = vld [vmem:[%s234 + $0x10c] sm:$0xf]
        %v303 = vld [vmem:[%s234 + $0x110] sm:$0xf]
        %v304 = vld [vmem:[%s234 + $0x114] sm:$0xf]
        %v305 = vld [vmem:[%s234 + $0x118] sm:$0xf]
        %v306 = vld [vmem:[%s234 + $0x11c] sm:$0xf]
        %v307 = vld [vmem:[%s234 + $0x120] sm:$0xf]
        %v308 = vld [vmem:[%s234 + $0x124] sm:$0xf]
        %v309 = vld [vmem:[%s234 + $0x128] sm:$0xf]
        %v310 = vld [vmem:[%s234 + $0x12c] sm:$0xf]
        %v311 = vld [vmem:[%s234 + $0x130] sm:$0xf]
        %v312 = vld [vmem:[%s234 + $0x134] sm:$0xf]
        %v313 = vld [vmem:[%s234 + $0x138] sm:$0xf]
        %v314 = vld [vmem:[%s234 + $0x13c] sm:$0xf]
        %v315 = vld [vmem:[%s234 + $0x140] sm:$0xf]
        %v316 = vld [vmem:[%s234 + $0x144] sm:$0xf]
        %v317 = vld [vmem:[%s234 + $0x148] sm:$0xf]
        %v318 = vld [vmem:[%s234 + $0x14c] sm:$0xf]
        %v319 = vld [vmem:[%s234 + $0x150] sm:$0xf]
        %v320 = vld [vmem:[%s234 + $0x154] sm:$0xf]
        %v321 = vld [vmem:[%s234 + $0x158] sm:$0xf]
        %v322 = vld [vmem:[%s234 + $0x15c] sm:$0xf]
        %v323 = vld [vmem:[%s234 + $0x160] sm:$0xf]
        %v324 = vld [vmem:[%s234 + $0x164] sm:$0xf]
        %v325 = vld [vmem:[%s234 + $0x168] sm:$0xf]
        %v326 = vld [vmem:[%s234 + $0x16c] sm:$0xf]
        %v327 = vld [vmem:[%s234 + $0x170] sm:$0xf]
        %v328 = vld [vmem:[%s234 + $0x174] sm:$0xf]
        %v329 = vld [vmem:[%s234 + $0x178] sm:$0xf]
        %v330 = vld [vmem:[%s234 + $0x17c] sm:$0xf]
        %v331 = vld [vmem:[%s234 + $0x180] sm:$0xf]
        %v332 = vld [vmem:[%s234 + $0x184] sm:$0xf]
        %v333 = vld [vmem:[%s234 + $0x188] sm:$0xf]
        %v334 = vld [vmem:[%s234 + $0x18c] sm:$0xf]
        %v335 = vld [vmem:[%s234 + $0x190] sm:$0xf]
        %v336 = vld [vmem:[%s234 + $0x194] sm:$0xf]
        %v337 = vld [vmem:[%s234 + $0x198] sm:$0xf]
        %v338 = vld [vmem:[%s234 + $0x19c] sm:$0xf]
        %v339 = vld [vmem:[%s234 + $0x1a0] sm:$0xf]
        %v340 = vld [vmem:[%s234 + $0x1a4] sm:$0xf]
        %v341 = vld [vmem:[%s234 + $0x1a8] sm:$0xf]
        %v342 = vld [vmem:[%s234 + $0x1ac] sm:$0xf]
        %v343 = vld [vmem:[%s234 + $0x1b0] sm:$0xf]
        %v344 = vld [vmem:[%s234 + $0x1b4] sm:$0xf]
        %v345 = vld [vmem:[%s234 + $0x1b8] sm:$0xf]
        %v346 = vld [vmem:[%s234 + $0x1bc] sm:$0xf]
        %v347 = vld [vmem:[%s234 + $0x1c0] sm:$0xf]
        %v348 = vld [vmem:[%s234 + $0x1c4] sm:$0xf]
        %v349 = vld [vmem:[%s234 + $0x1c8] sm:$0xf]
        %v350 = vld [vmem:[%s234 + $0x1cc] sm:$0xf]
        %v351 = vld [vmem:[%s234 + $0x1d0] sm:$0xf]
        %v352 = vld [vmem:[%s234 + $0x1d4] sm:$0xf]
        %v353 = vld [vmem:[%s234 + $0x1d8] sm:$0xf]
        %v354 = vld [vmem:[%s234 + $0x1dc] sm:$0xf]
        %v355 = vld [vmem:[%s234 + $0x1e0] sm:$0xf]
        %v356 = vld [vmem:[%s234 + $0x1e4] sm:$0xf]
        %v357 = vld [vmem:[%s234 + $0x1e8] sm:$0xf]
        %v358 = vld [vmem:[%s234 + $0x1ec] sm:$0xf]
        %v359 = vld [vmem:[%s234 + $0x1f0] sm:$0xf]
        %v360 = vld [vmem:[%s234 + $0x1f4] sm:$0xf]
        %v361 = vld [vmem:[%s234 + $0x1f8] sm:$0xf]
        %v362 = vld [vmem:[%s234 + $0x1fc] sm:$0xf]
        %v363 = vld [vmem:[%s234 + $0x200] sm:$0xf]
        %v364 = vld [vmem:[%s234 + $0x204] sm:$0xf]
        %v365 = vld [vmem:[%s234 + $0x208] sm:$0xf]
        %v366 = vld [vmem:[%s234 + $0x20c] sm:$0xf]
        %v367 = vld [vmem:[%s234 + $0x210] sm:$0xf]
        %v368 = vld [vmem:[%s234 + $0x214] sm:$0xf]
        %v369 = vld [vmem:[%s234 + $0x218] sm:$0xf]
        %v370 = vld [vmem:[%s234 + $0x21c] sm:$0xf]
        %v371 = vld [vmem:[%s234 + $0x220] sm:$0xf]
        %v372 = vld [vmem:[%s234 + $0x224] sm:$0xf]
        %v373 = vld [vmem:[%s234 + $0x228] sm:$0xf]
        %v374 = vld [vmem:[%s234 + $0x22c] sm:$0xf]
        %v375 = vld [vmem:[%s234 + $0x230] sm:$0xf]
        %v376 = vld [vmem:[%s234 + $0x234] sm:$0xf]
        %v377 = vld [vmem:[%s234 + $0x238] sm:$0xf]
        %v378 = vld [vmem:[%s234 + $0x23c] sm:$0xf]
        %v379 = vld [vmem:[%s234 + $0x240] sm:$0xf]
        %v380 = vld [vmem:[%s234 + $0x244] sm:$0xf]
        %v381 = vld [vmem:[%s234 + $0x248] sm:$0xf]
        %v382 = vld [vmem:[%s234 + $0x24c] sm:$0xf]
        %v383 = vld [vmem:[%s234 + $0x250] sm:$0xf]
        %v384 = vld [vmem:[%s234 + $0x254] sm:$0xf]
        %v385 = vld [vmem:[%s234 + $0x258] sm:$0xf]
        %v386 = vld [vmem:[%s234 + $0x25c] sm:$0xf]
        %v387 = vld [vmem:[%s234 + $0x260] sm:$0xf]
        %v388 = vld [vmem:[%s234 + $0x264] sm:$0xf]
        %v389 = vld [vmem:[%s234 + $0x268] sm:$0xf]
        %v390 = vld [vmem:[%s234 + $0x26c] sm:$0xf]
        %v391 = vld [vmem:[%s234 + $0x270] sm:$0xf]
        %v392 = vld [vmem:[%s234 + $0x274] sm:$0xf]
        %v393 = vld [vmem:[%s234 + $0x278] sm:$0xf]
        %v394 = vld [vmem:[%s234 + $0x27c] sm:$0xf]
        %v395 = vld [vmem:[%s234 + $0x280] sm:$0xf]
        %v396 = vld [vmem:[%s234 + $0x284] sm:$0xf]
        %v397 = vld [vmem:[%s234 + $0x288] sm:$0xf]
        %v398 = vld [vmem:[%s234 + $0x28c] sm:$0xf]
        %v399 = vld [vmem:[%s234 + $0x290] sm:$0xf]
        %v400 = vld [vmem:[%s234 + $0x294] sm:$0xf]
        %v401 = vld [vmem:[%s234 + $0x298] sm:$0xf]
        %v402 = vld [vmem:[%s234 + $0x29c] sm:$0xf]
        %v403 = vld [vmem:[%s234 + $0x2a0] sm:$0xf]
        %v404 = vld [vmem:[%s234 + $0x2a4] sm:$0xf]
        %v405 = vld [vmem:[%s234 + $0x2a8] sm:$0xf]
        %v406 = vld [vmem:[%s234 + $0x2ac] sm:$0xf]
        %v407 = vld [vmem:[%s234 + $0x2b0] sm:$0xf]
        %v408 = vld [vmem:[%s234 + $0x2b4] sm:$0xf]
        %v409 = vld [vmem:[%s234 + $0x2b8] sm:$0xf]
        %v410 = vld [vmem:[%s234 + $0x2bc] sm:$0xf]
        %v411 = vld [vmem:[%s234 + $0x2c0] sm:$0xf]
        %v412 = vld [vmem:[%s234 + $0x2c4] sm:$0xf]
        %v413 = vld [vmem:[%s234 + $0x2c8] sm:$0xf]
        %v414 = vld [vmem:[%s234 + $0x2cc] sm:$0xf]
        %v415 = vld [vmem:[%s234 + $0x2d0] sm:$0xf]
        %v416 = vld [vmem:[%s234 + $0x2d4] sm:$0xf]
        %v417 = vld [vmem:[%s234 + $0x2d8] sm:$0xf]
        %v418 = vld [vmem:[%s234 + $0x2dc] sm:$0xf]
        %v419 = vld [vmem:[%s234 + $0x2e0] sm:$0xf]
        %v420 = vld [vmem:[%s234 + $0x2e4] sm:$0xf]
        %v421 = vld [vmem:[%s234 + $0x2e8] sm:$0xf]
        %v422 = vld [vmem:[%s234 + $0x2ec] sm:$0xf]
        %v423 = vld [vmem:[%s234 + $0x2f0] sm:$0xf]
        %v424 = vld [vmem:[%s234 + $0x2f4] sm:$0xf]
        %v425 = vld [vmem:[%s234 + $0x2f8] sm:$0xf]
        %v426 = vld [vmem:[%s234 + $0x2fc] sm:$0xf]
        %v427 = vld [vmem:[%s234 + $0x300] sm:$0xf]
        %v428 = vld [vmem:[%s234 + $0x304] sm:$0xf]
        %v429 = vld [vmem:[%s234 + $0x308] sm:$0xf]
        %v430 = vld [vmem:[%s234 + $0x30c] sm:$0xf]
        %v431 = vld [vmem:[%s234 + $0x310] sm:$0xf]
        %v432 = vld [vmem:[%s234 + $0x314] sm:$0xf]
        %v433 = vld [vmem:[%s234 + $0x318] sm:$0xf]
        %v434 = vld [vmem:[%s234 + $0x31c] sm:$0xf]
        %v435 = vld [vmem:[%s234 + $0x320] sm:$0xf]
        %v436 = vld [vmem:[%s234 + $0x324] sm:$0xf]
        %v437 = vld [vmem:[%s234 + $0x328] sm:$0xf]
        %v438 = vld [vmem:[%s234 + $0x32c] sm:$0xf]
        %v439 = vld [vmem:[%s234 + $0x330] sm:$0xf]
        %v440 = vld [vmem:[%s234 + $0x334] sm:$0xf]
        %v441 = vld [vmem:[%s234 + $0x338] sm:$0xf]
        %v442 = vld [vmem:[%s234 + $0x33c] sm:$0xf]
        %v443 = vld [vmem:[%s234 + $0x340] sm:$0xf]
        %v444 = vld [vmem:[%s234 + $0x344] sm:$0xf]
        %v445 = vld [vmem:[%s234 + $0x348] sm:$0xf]
        %v446 = vld [vmem:[%s234 + $0x34c] sm:$0xf]
        %v447 = vld [vmem:[%s234 + $0x350] sm:$0xf]
        %v448 = vld [vmem:[%s234 + $0x354] sm:$0xf]
        %v449 = vld [vmem:[%s234 + $0x358] sm:$0xf]
        %v450 = vld [vmem:[%s234 + $0x35c] sm:$0xf]
        %v451 = vld [vmem:[%s234 + $0x360] sm:$0xf]
        %v452 = vld [vmem:[%s234 + $0x364] sm:$0xf]
        %v453 = vld [vmem:[%s234 + $0x368] sm:$0xf]
        %v454 = vld [vmem:[%s234 + $0x36c] sm:$0xf]
        %v455 = vld [vmem:[%s234 + $0x370] sm:$0xf]
        %v456 = vld [vmem:[%s234 + $0x374] sm:$0xf]
        %v457 = vld [vmem:[%s234 + $0x378] sm:$0xf]
        %v458 = vld [vmem:[%s234 + $0x37c] sm:$0xf]
        %v459 = vld [vmem:[%s234 + $0x380] sm:$0xf]
        %v460 = vld [vmem:[%s234 + $0x384] sm:$0xf]
        %v461 = vld [vmem:[%s234 + $0x388] sm:$0xf]
        %v462 = vld [vmem:[%s234 + $0x38c] sm:$0xf]
        %v463 = vld [vmem:[%s234 + $0x390] sm:$0xf]
        %v464 = vld [vmem:[%s234 + $0x394] sm:$0xf]
        %v465 = vld [vmem:[%s234 + $0x398] sm:$0xf]
        %v466 = vld [vmem:[%s234 + $0x39c] sm:$0xf]
        %v467 = vld [vmem:[%s234 + $0x3a0] sm:$0xf]
        %v468 = vld [vmem:[%s234 + $0x3a4] sm:$0xf]
        %v469 = vld [vmem:[%s234 + $0x3a8] sm:$0xf]
        %v470 = vld [vmem:[%s234 + $0x3ac] sm:$0xf]
        %v471 = vld [vmem:[%s234 + $0x3b0] sm:$0xf]
        %v472 = vld [vmem:[%s234 + $0x3b4] sm:$0xf]
        %v473 = vld [vmem:[%s234 + $0x3b8] sm:$0xf]
        %v474 = vld [vmem:[%s234 + $0x3bc] sm:$0xf]
        %v475 = vld [vmem:[%s234 + $0x3c0] sm:$0xf]
        %v476 = vld [vmem:[%s234 + $0x3c4] sm:$0xf]
        %v477 = vld [vmem:[%s234 + $0x3c8] sm:$0xf]
        %v478 = vld [vmem:[%s234 + $0x3cc] sm:$0xf]
        %v479 = vld [vmem:[%s234 + $0x3d0] sm:$0xf]
        %v480 = vld [vmem:[%s234 + $0x3d4] sm:$0xf]
        %v481 = vld [vmem:[%s234 + $0x3d8] sm:$0xf]
        %v482 = vld [vmem:[%s234 + $0x3dc] sm:$0xf]
        %v483 = vld [vmem:[%s234 + $0x3e0] sm:$0xf]
        %v484 = vld [vmem:[%s234 + $0x3e4] sm:$0xf]
        %v485 = vld [vmem:[%s234 + $0x3e8] sm:$0xf]
        %v486 = vld [vmem:[%s234 + $0x3ec] sm:$0xf]
        %v487 = vld [vmem:[%s234 + $0x3f0] sm:$0xf]
        %v488 = vld [vmem:[%s234 + $0x3f4] sm:$0xf]
        %v489 = vld [vmem:[%s234 + $0x3f8] sm:$0xf]
        %v490 = vld [vmem:[%s234 + $0x3fc] sm:$0xf]
        %v491 = vld [vmem:[%s234 + $0x400] sm:$0xf]
        %v492 = vld [vmem:[%s234 + $0x404] sm:$0xf]
        %v493 = vld [vmem:[%s234 + $0x408] sm:$0xf]
        %v494 = vld [vmem:[%s234 + $0x40c] sm:$0xf]
        %v495 = vld [vmem:[%s234 + $0x410] sm:$0xf]
        %v496 = vld [vmem:[%s234 + $0x414] sm:$0xf]
        %v497 = vld [vmem:[%s234 + $0x418] sm:$0xf]
        %v498 = vld [vmem:[%s234 + $0x41c] sm:$0xf]
        %v499 = vld [vmem:[%s234 + $0x420] sm:$0xf]
        %v500 = vld [vmem:[%s234 + $0x424] sm:$0xf]
        %v501 = vld [vmem:[%s234 + $0x428] sm:$0xf]
        %v502 = vld [vmem:[%s234 + $0x42c] sm:$0xf]
        %v503 = vld [vmem:[%s234 + $0x430] sm:$0xf]
        %v504 = vld [vmem:[%s234 + $0x434] sm:$0xf]
        %v505 = vld [vmem:[%s234 + $0x438] sm:$0xf]
        %v506 = vld [vmem:[%s234 + $0x43c] sm:$0xf]
        %v507 = vld [vmem:[%s234 + $0x440] sm:$0xf]
        %v508 = vld [vmem:[%s234 + $0x444] sm:$0xf]
        %v509 = vld [vmem:[%s234 + $0x448] sm:$0xf]
        %v510 = vld [vmem:[%s234 + $0x44c] sm:$0xf]
        %v511 = vld [vmem:[%s234 + $0x450] sm:$0xf]
        %v512 = vld [vmem:[%s234 + $0x454] sm:$0xf]
        %v513 = vld [vmem:[%s234 + $0x458] sm:$0xf]
        %v514 = vld [vmem:[%s234 + $0x45c] sm:$0xf]
        %v515 = vld [vmem:[%s234 + $0x460] sm:$0xf]
        %v516 = vld [vmem:[%s234 + $0x464] sm:$0xf]
        %v517 = vld [vmem:[%s234 + $0x468] sm:$0xf]
        %v518 = vld [vmem:[%s234 + $0x46c] sm:$0xf]
        %v519 = vld [vmem:[%s234 + $0x470] sm:$0xf]
        %v520 = vld [vmem:[%s234 + $0x474] sm:$0xf]
        %v521 = vld [vmem:[%s234 + $0x478] sm:$0xf]
        %v522 = vld [vmem:[%s234 + $0x47c] sm:$0xf]
        %v523 = vld [vmem:[%s234 + $0x480] sm:$0xf]
        %v524 = vld [vmem:[%s234 + $0x484] sm:$0xf]
        %v525 = vld [vmem:[%s234 + $0x488] sm:$0xf]
        %v526 = vld [vmem:[%s234 + $0x48c] sm:$0xf]
        %v527 = vld [vmem:[%s234 + $0x490] sm:$0xf]
        %v528 = vld [vmem:[%s234 + $0x494] sm:$0xf]
        %v529 = vld [vmem:[%s234 + $0x498] sm:$0xf]
        %v530 = vld [vmem:[%s234 + $0x49c] sm:$0xf]
        %v531 = vld [vmem:[%s234 + $0x4a0] sm:$0xf]
        %v532 = vld [vmem:[%s234 + $0x4a4] sm:$0xf]
        %v533 = vld [vmem:[%s234 + $0x4a8] sm:$0xf]
        %v534 = vld [vmem:[%s234 + $0x4ac] sm:$0xf]
        %v535 = vld [vmem:[%s234 + $0x4b0] sm:$0xf]
        %v536 = vld [vmem:[%s234 + $0x4b4] sm:$0xf]
        %v537 = vld [vmem:[%s234 + $0x4b8] sm:$0xf]
        %v538 = vld [vmem:[%s234 + $0x4bc] sm:$0xf]
        %v539 = vld [vmem:[%s234 + $0x4c0] sm:$0xf]
        %v540 = vld [vmem:[%s234 + $0x4c4] sm:$0xf]
        %v541 = vld [vmem:[%s234 + $0x4c8] sm:$0xf]
        %v542 = vld [vmem:[%s234 + $0x4cc] sm:$0xf]
        %v543 = vld [vmem:[%s234 + $0x4d0] sm:$0xf]
        %v544 = vld [vmem:[%s234 + $0x4d4] sm:$0xf]
        %v545 = vld [vmem:[%s234 + $0x4d8] sm:$0xf]
        %v546 = vld [vmem:[%s234 + $0x4dc] sm:$0xf]
        %v547 = vld [vmem:[%s234 + $0x4e0] sm:$0xf]
        %v548 = vld [vmem:[%s234 + $0x4e4] sm:$0xf]
        %v549 = vld [vmem:[%s234 + $0x4e8] sm:$0xf]
        %v550 = vld [vmem:[%s234 + $0x4ec] sm:$0xf]
        %v551 = vld [vmem:[%s234 + $0x4f0] sm:$0xf]
        %v552 = vld [vmem:[%s234 + $0x4f4] sm:$0xf]
        %v553 = vld [vmem:[%s234 + $0x4f8] sm:$0xf]
        %v554 = vld [vmem:[%s234 + $0x4fc] sm:$0xf]
        %v555 = vld [vmem:[%s234 + $0x500] sm:$0xf]
        %v556 = vld [vmem:[%s234 + $0x504] sm:$0xf]
        %v557 = vld [vmem:[%s234 + $0x508] sm:$0xf]
        %v558 = vld [vmem:[%s234 + $0x50c] sm:$0xf]
        %v559 = vld [vmem:[%s234 + $0x510] sm:$0xf]
        %v560 = vld [vmem:[%s234 + $0x514] sm:$0xf]
        %v561 = vld [vmem:[%s234 + $0x518] sm:$0xf]
        %v562 = vld [vmem:[%s234 + $0x51c] sm:$0xf]
        %v563 = vld [vmem:[%s234 + $0x520] sm:$0xf]
        %v564 = vld [vmem:[%s234 + $0x524] sm:$0xf]
        %v565 = vld [vmem:[%s234 + $0x528] sm:$0xf]
        %v566 = vld [vmem:[%s234 + $0x52c] sm:$0xf]
        %v567 = vld [vmem:[%s234 + $0x530] sm:$0xf]
        %v568 = vld [vmem:[%s234 + $0x534] sm:$0xf]
        %v569 = vld [vmem:[%s234 + $0x538] sm:$0xf]
        %v570 = vld [vmem:[%s234 + $0x53c] sm:$0xf]
        %v571 = vld [vmem:[%s234 + $0x540] sm:$0xf]
        %v572 = vld [vmem:[%s234 + $0x544] sm:$0xf]
        %v573 = vld [vmem:[%s234 + $0x548] sm:$0xf]
        %v574 = vld [vmem:[%s234 + $0x54c] sm:$0xf]
        %v575 = vld [vmem:[%s234 + $0x550] sm:$0xf]
        %v576 = vld [vmem:[%s234 + $0x554] sm:$0xf]
        %v577 = vld [vmem:[%s234 + $0x558] sm:$0xf]
        %v578 = vld [vmem:[%s234 + $0x55c] sm:$0xf]
        %v579 = vld [vmem:[%s234 + $0x560] sm:$0xf]
        %v580 = vld [vmem:[%s234 + $0x564] sm:$0xf]
        %v581 = vld [vmem:[%s234 + $0x568] sm:$0xf]
        %v582 = vld [vmem:[%s234 + $0x56c] sm:$0xf]
        %v583 = vld [vmem:[%s234 + $0x570] sm:$0xf]
        %v584 = vld [vmem:[%s234 + $0x574] sm:$0xf]
        %v585 = vld [vmem:[%s234 + $0x578] sm:$0xf]
        %v586 = vld [vmem:[%s234 + $0x57c] sm:$0xf]
        %v587 = vld [vmem:[%s234 + $0x580] sm:$0xf]
        %v588 = vld [vmem:[%s234 + $0x584] sm:$0xf]
        %v589 = vld [vmem:[%s234 + $0x588] sm:$0xf]
        %v590 = vld [vmem:[%s234 + $0x58c] sm:$0xf]
        %v591 = vld [vmem:[%s234 + $0x590] sm:$0xf]
        %v592 = vld [vmem:[%s234 + $0x594] sm:$0xf]
        %v593 = vld [vmem:[%s234 + $0x598] sm:$0xf]
        %v594 = vld [vmem:[%s234 + $0x59c] sm:$0xf]
        %v595 = vld [vmem:[%s234 + $0x5a0] sm:$0xf]
        %v596 = vld [vmem:[%s234 + $0x5a4] sm:$0xf]
        %v597 = vld [vmem:[%s234 + $0x5a8] sm:$0xf]
        %v598 = vld [vmem:[%s234 + $0x5ac] sm:$0xf]
        %v599 = vld [vmem:[%s234 + $0x5b0] sm:$0xf]
        %v600 = vld [vmem:[%s234 + $0x5b4] sm:$0xf]
        %v601 = vld [vmem:[%s234 + $0x5b8] sm:$0xf]
        %v602 = vld [vmem:[%s234 + $0x5bc] sm:$0xf]
        %v603 = vld [vmem:[%s234 + $0x5c0] sm:$0xf]
        %v604 = vld [vmem:[%s234 + $0x5c4] sm:$0xf]
        %v605 = vld [vmem:[%s234 + $0x5c8] sm:$0xf]
        %v606 = vld [vmem:[%s234 + $0x5cc] sm:$0xf]
        %v607 = vld [vmem:[%s234 + $0x5d0] sm:$0xf]
        %v608 = vld [vmem:[%s234 + $0x5d4] sm:$0xf]
        %v609 = vld [vmem:[%s234 + $0x5d8] sm:$0xf]
        %v610 = vld [vmem:[%s234 + $0x5dc] sm:$0xf]
        %v611 = vld [vmem:[%s234 + $0x5e0] sm:$0xf]
        %v612 = vld [vmem:[%s234 + $0x5e4] sm:$0xf]
        %v613 = vld [vmem:[%s234 + $0x5e8] sm:$0xf]
        %v614 = vld [vmem:[%s234 + $0x5ec] sm:$0xf]
        %v615 = vld [vmem:[%s234 + $0x5f0] sm:$0xf]
        %v616 = vld [vmem:[%s234 + $0x5f4] sm:$0xf]
        %v617 = vld [vmem:[%s234 + $0x5f8] sm:$0xf]
        %v618 = vld [vmem:[%s234 + $0x5fc] sm:$0xf]
        %v619 = vld [vmem:[%s234 + $0x600] sm:$0xf]
        %v620 = vld [vmem:[%s234 + $0x604] sm:$0xf]
        %v621 = vld [vmem:[%s234 + $0x608] sm:$0xf]
        %v622 = vld [vmem:[%s234 + $0x60c] sm:$0xf]
        %v623 = vld [vmem:[%s234 + $0x610] sm:$0xf]
        %v624 = vld [vmem:[%s234 + $0x614] sm:$0xf]
        %v625 = vld [vmem:[%s234 + $0x618] sm:$0xf]
        %v626 = vld [vmem:[%s234 + $0x61c] sm:$0xf]
        %v627 = vld [vmem:[%s234 + $0x620] sm:$0xf]
        %v628 = vld [vmem:[%s234 + $0x624] sm:$0xf]
        %v629 = vld [vmem:[%s234 + $0x628] sm:$0xf]
        %v630 = vld [vmem:[%s234 + $0x62c] sm:$0xf]
        %v631 = vld [vmem:[%s234 + $0x630] sm:$0xf]
        %v632 = vld [vmem:[%s234 + $0x634] sm:$0xf]
        %v633 = vld [vmem:[%s234 + $0x638] sm:$0xf]
        %v634 = vld [vmem:[%s234 + $0x63c] sm:$0xf]
        %v635 = vld [vmem:[%s197] sm:$0xff]
        %v636 = vld [vmem:[%s197 + $0x8] sm:$0xff]
        %v637 = vld [vmem:[%s197 + $0x10] sm:$0xff]
        %v638 = vld [vmem:[%s197 + $0x18] sm:$0xff]
        %v639 = vld [vmem:[%s197 + $0x20] sm:$0xff]
        %v640 = vld [vmem:[%s197 + $0x28] sm:$0xff]
        %v641 = vld [vmem:[%s197 + $0x30] sm:$0xff]
        %v642 = vld [vmem:[%s197 + $0x38] sm:$0xff]
        %v643 = vld [vmem:[%s197 + $0x40] sm:$0xff]
        %v644 = vld [vmem:[%s197 + $0x48] sm:$0xff]
        %v645 = vld [vmem:[%s197 + $0x50] sm:$0xff]
        %v646 = vld [vmem:[%s197 + $0x58] sm:$0xff]
        %v647 = vld [vmem:[%s197 + $0x60] sm:$0xff]
        %v648 = vld [vmem:[%s197 + $0x68] sm:$0xff]
        %v649 = vld [vmem:[%s197 + $0x70] sm:$0xff]
        %v650 = vld [vmem:[%s197 + $0x78] sm:$0xff]
        %v651 = vld [vmem:[%s197 + $0x80] sm:$0xff]
        %v652 = vld [vmem:[%s197 + $0x88] sm:$0xff]
        %v653 = vld [vmem:[%s197 + $0x90] sm:$0xff]
        %v654 = vld [vmem:[%s197 + $0x98] sm:$0xff]
        %v655 = vld [vmem:[%s197 + $0xa0] sm:$0xff]
        %v656 = vld [vmem:[%s197 + $0xa8] sm:$0xff]
        %v657 = vld [vmem:[%s197 + $0xb0] sm:$0xff]
        %v658 = vld [vmem:[%s197 + $0xb8] sm:$0xff]
        %v659 = vld [vmem:[%s197 + $0xc0] sm:$0xff]
        %v660 = vpack.c.bf16 %v635, %v635
        %v661 = vpack.c.bf16 %v636, %v636
        %v662 = vpack.c.bf16 %v637, %v637
        %v663 = vpack.c.bf16 %v638, %v638
        %v664 = vpack.c.bf16 %v639, %v639
        %v665 = vpack.c.bf16 %v640, %v640
        %v666 = vpack.c.bf16 %v641, %v641
        %v667 = vpack.c.bf16 %v642, %v642
        %v668 = vpack.c.bf16 %v643, %v643
        %v669 = vpack.c.bf16 %v644, %v644
        %v670 = vpack.c.bf16 %v645, %v645
        %v671 = vpack.c.bf16 %v646, %v646
        %v672 = vpack.c.bf16 %v647, %v647
        %v673 = vpack.c.bf16 %v648, %v648
        %v674 = vpack.c.bf16 %v649, %v649
        %v675 = vpack.c.bf16 %v650, %v650
        %v676 = vpack.c.bf16 %v651, %v651
        %v677 = vpack.c.bf16 %v652, %v652
        %v678 = vpack.c.bf16 %v653, %v653
        %v679 = vpack.c.bf16 %v654, %v654
        %v680 = vpack.c.bf16 %v655, %v655
        %v681 = vpack.c.bf16 %v656, %v656
        %v682 = vpack.c.bf16 %v657, %v657
        %v683 = vpack.c.bf16 %v658, %v658
        %v684 = vpack.c.bf16 %v659, %v659
        %v685 = vld [vmem:[#allocation2] sm:$0xff]
        %v1086 = vunpack.c.l.b16 %v235
        %v1087 = vunpack.c.l.b16 %v236
        %v1088 = vunpack.c.l.b16 %v237
        %v1089 = vunpack.c.l.b16 %v238
        %v1090 = vunpack.c.l.b16 %v239
        %v1091 = vunpack.c.l.b16 %v240
        %v1092 = vunpack.c.l.b16 %v241
        %v1093 = vunpack.c.l.b16 %v242
        %v1094 = vunpack.c.l.b16 %v243
        %v1095 = vunpack.c.l.b16 %v244
        %v1096 = vunpack.c.l.b16 %v245
        %v1097 = vunpack.c.l.b16 %v246
        %v1098 = vunpack.c.l.b16 %v247
        %v1099 = vunpack.c.l.b16 %v248
        %v1100 = vunpack.c.l.b16 %v249
        %v1101 = vunpack.c.l.b16 %v250
        %v1102 = vunpack.c.l.b16 %v251
        %v1103 = vunpack.c.l.b16 %v252
        %v1104 = vunpack.c.l.b16 %v253
        %v1105 = vunpack.c.l.b16 %v254
        %v1106 = vunpack.c.l.b16 %v255
        %v1107 = vunpack.c.l.b16 %v256
        %v1108 = vunpack.c.l.b16 %v257
        %v1109 = vunpack.c.l.b16 %v258
        %v1110 = vunpack.c.l.b16 %v259
        %v1111 = vunpack.c.l.b16 %v260
        %v1112 = vunpack.c.l.b16 %v261
        %v1113 = vunpack.c.l.b16 %v262
        %v1114 = vunpack.c.l.b16 %v263
        %v1115 = vunpack.c.l.b16 %v264
        %v1116 = vunpack.c.l.b16 %v265
        %v1117 = vunpack.c.l.b16 %v266
        %v1118 = vunpack.c.l.b16 %v267
        %v1119 = vunpack.c.l.b16 %v268
        %v1120 = vunpack.c.l.b16 %v269
        %v1121 = vunpack.c.l.b16 %v270
        %v1122 = vunpack.c.l.b16 %v271
        %v1123 = vunpack.c.l.b16 %v272
        %v1124 = vunpack.c.l.b16 %v273
        %v1125 = vunpack.c.l.b16 %v274
        %v1126 = vunpack.c.l.b16 %v275
        %v1127 = vunpack.c.l.b16 %v276
        %v1128 = vunpack.c.l.b16 %v277
        %v1129 = vunpack.c.l.b16 %v278
        %v1130 = vunpack.c.l.b16 %v279
        %v1131 = vunpack.c.l.b16 %v280
        %v1132 = vunpack.c.l.b16 %v281
        %v1133 = vunpack.c.l.b16 %v282
        %v1134 = vunpack.c.l.b16 %v283
        %v1135 = vunpack.c.l.b16 %v284
        %v1136 = vunpack.c.l.b16 %v285
        %v1137 = vunpack.c.l.b16 %v286
        %v1138 = vunpack.c.l.b16 %v287
        %v1139 = vunpack.c.l.b16 %v288
        %v1140 = vunpack.c.l.b16 %v289
        %v1141 = vunpack.c.l.b16 %v290
        %v1142 = vunpack.c.l.b16 %v291
        %v1143 = vunpack.c.l.b16 %v292
        %v1144 = vunpack.c.l.b16 %v293
        %v1145 = vunpack.c.l.b16 %v294
        %v1146 = vunpack.c.l.b16 %v295
        %v1147 = vunpack.c.l.b16 %v296
        %v1148 = vunpack.c.l.b16 %v297
        %v1149 = vunpack.c.l.b16 %v298
        %v1150 = vunpack.c.l.b16 %v299
        %v1151 = vunpack.c.l.b16 %v300
        %v1152 = vunpack.c.l.b16 %v301
        %v1153 = vunpack.c.l.b16 %v302
        %v1154 = vunpack.c.l.b16 %v303
        %v1155 = vunpack.c.l.b16 %v304
        %v1156 = vunpack.c.l.b16 %v305
        %v1157 = vunpack.c.l.b16 %v306
        %v1158 = vunpack.c.l.b16 %v307
        %v1159 = vunpack.c.l.b16 %v308
        %v1160 = vunpack.c.l.b16 %v309
        %v1161 = vunpack.c.l.b16 %v310
        %v1162 = vunpack.c.l.b16 %v311
        %v1163 = vunpack.c.l.b16 %v312
        %v1164 = vunpack.c.l.b16 %v313
        %v1165 = vunpack.c.l.b16 %v314
        %v1166 = vunpack.c.l.b16 %v315
        %v1167 = vunpack.c.l.b16 %v316
        %v1168 = vunpack.c.l.b16 %v317
        %v1169 = vunpack.c.l.b16 %v318
        %v1170 = vunpack.c.l.b16 %v319
        %v1171 = vunpack.c.l.b16 %v320
        %v1172 = vunpack.c.l.b16 %v321
        %v1173 = vunpack.c.l.b16 %v322
        %v1174 = vunpack.c.l.b16 %v323
        %v1175 = vunpack.c.l.b16 %v324
        %v1176 = vunpack.c.l.b16 %v325
        %v1177 = vunpack.c.l.b16 %v326
        %v1178 = vunpack.c.l.b16 %v327
        %v1179 = vunpack.c.l.b16 %v328
        %v1180 = vunpack.c.l.b16 %v329
        %v1181 = vunpack.c.l.b16 %v330
        %v1182 = vunpack.c.l.b16 %v331
        %v1183 = vunpack.c.l.b16 %v332
        %v1184 = vunpack.c.l.b16 %v333
        %v1185 = vunpack.c.l.b16 %v334
        %v1186 = vunpack.c.l.b16 %v335
        %v1187 = vunpack.c.l.b16 %v336
        %v1188 = vunpack.c.l.b16 %v337
        %v1189 = vunpack.c.l.b16 %v338
        %v1190 = vunpack.c.l.b16 %v339
        %v1191 = vunpack.c.l.b16 %v340
        %v1192 = vunpack.c.l.b16 %v341
        %v1193 = vunpack.c.l.b16 %v342
        %v1194 = vunpack.c.l.b16 %v343
        %v1195 = vunpack.c.l.b16 %v344
        %v1196 = vunpack.c.l.b16 %v345
        %v1197 = vunpack.c.l.b16 %v346
        %v1198 = vunpack.c.l.b16 %v347
        %v1199 = vunpack.c.l.b16 %v348
        %v1200 = vunpack.c.l.b16 %v349
        %v1201 = vunpack.c.l.b16 %v350
        %v1202 = vunpack.c.l.b16 %v351
        %v1203 = vunpack.c.l.b16 %v352
        %v1204 = vunpack.c.l.b16 %v353
        %v1205 = vunpack.c.l.b16 %v354
        %v1206 = vunpack.c.l.b16 %v355
        %v1207 = vunpack.c.l.b16 %v356
        %v1208 = vunpack.c.l.b16 %v357
        %v1209 = vunpack.c.l.b16 %v358
        %v1210 = vunpack.c.l.b16 %v359
        %v1211 = vunpack.c.l.b16 %v360
        %v1212 = vunpack.c.l.b16 %v361
        %v1213 = vunpack.c.l.b16 %v362
        %v1214 = vunpack.c.l.b16 %v363
        %v1215 = vunpack.c.l.b16 %v364
        %v1216 = vunpack.c.l.b16 %v365
        %v1217 = vunpack.c.l.b16 %v366
        %v1218 = vunpack.c.l.b16 %v367
        %v1219 = vunpack.c.l.b16 %v368
        %v1220 = vunpack.c.l.b16 %v369
        %v1221 = vunpack.c.l.b16 %v370
        %v1222 = vunpack.c.l.b16 %v371
        %v1223 = vunpack.c.l.b16 %v372
        %v1224 = vunpack.c.l.b16 %v373
        %v1225 = vunpack.c.l.b16 %v374
        %v1226 = vunpack.c.l.b16 %v375
        %v1227 = vunpack.c.l.b16 %v376
        %v1228 = vunpack.c.l.b16 %v377
        %v1229 = vunpack.c.l.b16 %v378
        %v1230 = vunpack.c.l.b16 %v379
        %v1231 = vunpack.c.l.b16 %v380
        %v1232 = vunpack.c.l.b16 %v381
        %v1233 = vunpack.c.l.b16 %v382
        %v1234 = vunpack.c.l.b16 %v383
        %v1235 = vunpack.c.l.b16 %v384
        %v1236 = vunpack.c.l.b16 %v385
        %v1237 = vunpack.c.l.b16 %v386
        %v1238 = vunpack.c.l.b16 %v387
        %v1239 = vunpack.c.l.b16 %v388
        %v1240 = vunpack.c.l.b16 %v389
        %v1241 = vunpack.c.l.b16 %v390
        %v1242 = vunpack.c.l.b16 %v391
        %v1243 = vunpack.c.l.b16 %v392
        %v1244 = vunpack.c.l.b16 %v393
        %v1245 = vunpack.c.l.b16 %v394
        %v1246 = vunpack.c.l.b16 %v395
        %v1247 = vunpack.c.l.b16 %v396
        %v1248 = vunpack.c.l.b16 %v397
        %v1249 = vunpack.c.l.b16 %v398
        %v1250 = vunpack.c.l.b16 %v399
        %v1251 = vunpack.c.l.b16 %v400
        %v1252 = vunpack.c.l.b16 %v401
        %v1253 = vunpack.c.l.b16 %v402
        %v1254 = vunpack.c.l.b16 %v403
        %v1255 = vunpack.c.l.b16 %v404
        %v1256 = vunpack.c.l.b16 %v405
        %v1257 = vunpack.c.l.b16 %v406
        %v1258 = vunpack.c.l.b16 %v407
        %v1259 = vunpack.c.l.b16 %v408
        %v1260 = vunpack.c.l.b16 %v409
        %v1261 = vunpack.c.l.b16 %v410
        %v1262 = vunpack.c.l.b16 %v411
        %v1263 = vunpack.c.l.b16 %v412
        %v1264 = vunpack.c.l.b16 %v413
        %v1265 = vunpack.c.l.b16 %v414
        %v1266 = vunpack.c.l.b16 %v415
        %v1267 = vunpack.c.l.b16 %v416
        %v1268 = vunpack.c.l.b16 %v417
        %v1269 = vunpack.c.l.b16 %v418
        %v1270 = vunpack.c.l.b16 %v419
        %v1271 = vunpack.c.l.b16 %v420
        %v1272 = vunpack.c.l.b16 %v421
        %v1273 = vunpack.c.l.b16 %v422
        %v1274 = vunpack.c.l.b16 %v423
        %v1275 = vunpack.c.l.b16 %v424
        %v1276 = vunpack.c.l.b16 %v425
        %v1277 = vunpack.c.l.b16 %v426
        %v1278 = vunpack.c.l.b16 %v427
        %v1279 = vunpack.c.l.b16 %v428
        %v1280 = vunpack.c.l.b16 %v429
        %v1281 = vunpack.c.l.b16 %v430
        %v1282 = vunpack.c.l.b16 %v431
        %v1283 = vunpack.c.l.b16 %v432
        %v1284 = vunpack.c.l.b16 %v433
        %v1285 = vunpack.c.l.b16 %v434
        %v1286 = vunpack.c.l.b16 %v435
        %v1287 = vunpack.c.l.b16 %v436
        %v1288 = vunpack.c.l.b16 %v437
        %v1289 = vunpack.c.l.b16 %v438
        %v1290 = vunpack.c.l.b16 %v439
        %v1291 = vunpack.c.l.b16 %v440
        %v1292 = vunpack.c.l.b16 %v441
        %v1293 = vunpack.c.l.b16 %v442
        %v1294 = vunpack.c.l.b16 %v443
        %v1295 = vunpack.c.l.b16 %v444
        %v1296 = vunpack.c.l.b16 %v445
        %v1297 = vunpack.c.l.b16 %v446
        %v1298 = vunpack.c.l.b16 %v447
        %v1299 = vunpack.c.l.b16 %v448
        %v1300 = vunpack.c.l.b16 %v449
        %v1301 = vunpack.c.l.b16 %v450
        %v1302 = vunpack.c.l.b16 %v451
        %v1303 = vunpack.c.l.b16 %v452
        %v1304 = vunpack.c.l.b16 %v453
        %v1305 = vunpack.c.l.b16 %v454
        %v1306 = vunpack.c.l.b16 %v455
        %v1307 = vunpack.c.l.b16 %v456
        %v1308 = vunpack.c.l.b16 %v457
        %v1309 = vunpack.c.l.b16 %v458
        %v1310 = vunpack.c.l.b16 %v459
        %v1311 = vunpack.c.l.b16 %v460
        %v1312 = vunpack.c.l.b16 %v461
        %v1313 = vunpack.c.l.b16 %v462
        %v1314 = vunpack.c.l.b16 %v463
        %v1315 = vunpack.c.l.b16 %v464
        %v1316 = vunpack.c.l.b16 %v465
        %v1317 = vunpack.c.l.b16 %v466
        %v1318 = vunpack.c.l.b16 %v467
        %v1319 = vunpack.c.l.b16 %v468
        %v1320 = vunpack.c.l.b16 %v469
        %v1321 = vunpack.c.l.b16 %v470
        %v1322 = vunpack.c.l.b16 %v471
        %v1323 = vunpack.c.l.b16 %v472
        %v1324 = vunpack.c.l.b16 %v473
        %v1325 = vunpack.c.l.b16 %v474
        %v1326 = vunpack.c.l.b16 %v475
        %v1327 = vunpack.c.l.b16 %v476
        %v1328 = vunpack.c.l.b16 %v477
        %v1329 = vunpack.c.l.b16 %v478
        %v1330 = vunpack.c.l.b16 %v479
        %v1331 = vunpack.c.l.b16 %v480
        %v1332 = vunpack.c.l.b16 %v481
        %v1333 = vunpack.c.l.b16 %v482
        %v1334 = vunpack.c.l.b16 %v483
        %v1335 = vunpack.c.l.b16 %v484
        %v1336 = vunpack.c.l.b16 %v485
        %v1337 = vunpack.c.l.b16 %v486
        %v1338 = vunpack.c.l.b16 %v487
        %v1339 = vunpack.c.l.b16 %v488
        %v1340 = vunpack.c.l.b16 %v489
        %v1341 = vunpack.c.l.b16 %v490
        %v1342 = vunpack.c.l.b16 %v491
        %v1343 = vunpack.c.l.b16 %v492
        %v1344 = vunpack.c.l.b16 %v493
        %v1345 = vunpack.c.l.b16 %v494
        %v1346 = vunpack.c.l.b16 %v495
        %v1347 = vunpack.c.l.b16 %v496
        %v1348 = vunpack.c.l.b16 %v497
        %v1349 = vunpack.c.l.b16 %v498
        %v1350 = vunpack.c.l.b16 %v499
        %v1351 = vunpack.c.l.b16 %v500
        %v1352 = vunpack.c.l.b16 %v501
        %v1353 = vunpack.c.l.b16 %v502
        %v1354 = vunpack.c.l.b16 %v503
        %v1355 = vunpack.c.l.b16 %v504
        %v1356 = vunpack.c.l.b16 %v505
        %v1357 = vunpack.c.l.b16 %v506
        %v1358 = vunpack.c.l.b16 %v507
        %v1359 = vunpack.c.l.b16 %v508
        %v1360 = vunpack.c.l.b16 %v509
        %v1361 = vunpack.c.l.b16 %v510
        %v1362 = vunpack.c.l.b16 %v511
        %v1363 = vunpack.c.l.b16 %v512
        %v1364 = vunpack.c.l.b16 %v513
        %v1365 = vunpack.c.l.b16 %v514
        %v1366 = vunpack.c.l.b16 %v515
        %v1367 = vunpack.c.l.b16 %v516
        %v1368 = vunpack.c.l.b16 %v517
        %v1369 = vunpack.c.l.b16 %v518
        %v1370 = vunpack.c.l.b16 %v519
        %v1371 = vunpack.c.l.b16 %v520
        %v1372 = vunpack.c.l.b16 %v521
        %v1373 = vunpack.c.l.b16 %v522
        %v1374 = vunpack.c.l.b16 %v523
        %v1375 = vunpack.c.l.b16 %v524
        %v1376 = vunpack.c.l.b16 %v525
        %v1377 = vunpack.c.l.b16 %v526
        %v1378 = vunpack.c.l.b16 %v527
        %v1379 = vunpack.c.l.b16 %v528
        %v1380 = vunpack.c.l.b16 %v529
        %v1381 = vunpack.c.l.b16 %v530
        %v1382 = vunpack.c.l.b16 %v531
        %v1383 = vunpack.c.l.b16 %v532
        %v1384 = vunpack.c.l.b16 %v533
        %v1385 = vunpack.c.l.b16 %v534
        %v1386 = vunpack.c.l.b16 %v535
        %v1387 = vunpack.c.l.b16 %v536
        %v1388 = vunpack.c.l.b16 %v537
        %v1389 = vunpack.c.l.b16 %v538
        %v1390 = vunpack.c.l.b16 %v539
        %v1391 = vunpack.c.l.b16 %v540
        %v1392 = vunpack.c.l.b16 %v541
        %v1393 = vunpack.c.l.b16 %v542
        %v1394 = vunpack.c.l.b16 %v543
        %v1395 = vunpack.c.l.b16 %v544
        %v1396 = vunpack.c.l.b16 %v545
        %v1397 = vunpack.c.l.b16 %v546
        %v1398 = vunpack.c.l.b16 %v547
        %v1399 = vunpack.c.l.b16 %v548
        %v1400 = vunpack.c.l.b16 %v549
        %v1401 = vunpack.c.l.b16 %v550
        %v1402 = vunpack.c.l.b16 %v551
        %v1403 = vunpack.c.l.b16 %v552
        %v1404 = vunpack.c.l.b16 %v553
        %v1405 = vunpack.c.l.b16 %v554
        %v1406 = vunpack.c.l.b16 %v555
        %v1407 = vunpack.c.l.b16 %v556
        %v1408 = vunpack.c.l.b16 %v557
        %v1409 = vunpack.c.l.b16 %v558
        %v1410 = vunpack.c.l.b16 %v559
        %v1411 = vunpack.c.l.b16 %v560
        %v1412 = vunpack.c.l.b16 %v561
        %v1413 = vunpack.c.l.b16 %v562
        %v1414 = vunpack.c.l.b16 %v563
        %v1415 = vunpack.c.l.b16 %v564
        %v1416 = vunpack.c.l.b16 %v565
        %v1417 = vunpack.c.l.b16 %v566
        %v1418 = vunpack.c.l.b16 %v567
        %v1419 = vunpack.c.l.b16 %v568
        %v1420 = vunpack.c.l.b16 %v569
        %v1421 = vunpack.c.l.b16 %v570
        %v1422 = vunpack.c.l.b16 %v571
        %v1423 = vunpack.c.l.b16 %v572
        %v1424 = vunpack.c.l.b16 %v573
        %v1425 = vunpack.c.l.b16 %v574
        %v1426 = vunpack.c.l.b16 %v575
        %v1427 = vunpack.c.l.b16 %v576
        %v1428 = vunpack.c.l.b16 %v577
        %v1429 = vunpack.c.l.b16 %v578
        %v1430 = vunpack.c.l.b16 %v579
        %v1431 = vunpack.c.l.b16 %v580
        %v1432 = vunpack.c.l.b16 %v581
        %v1433 = vunpack.c.l.b16 %v582
        %v1434 = vunpack.c.l.b16 %v583
        %v1435 = vunpack.c.l.b16 %v584
        %v1436 = vunpack.c.l.b16 %v585
        %v1437 = vunpack.c.l.b16 %v586
        %v1438 = vunpack.c.l.b16 %v587
        %v1439 = vunpack.c.l.b16 %v588
        %v1440 = vunpack.c.l.b16 %v589
        %v1441 = vunpack.c.l.b16 %v590
        %v1442 = vunpack.c.l.b16 %v591
        %v1443 = vunpack.c.l.b16 %v592
        %v1444 = vunpack.c.l.b16 %v593
        %v1445 = vunpack.c.l.b16 %v594
        %v1446 = vunpack.c.l.b16 %v595
        %v1447 = vunpack.c.l.b16 %v596
        %v1448 = vunpack.c.l.b16 %v597
        %v1449 = vunpack.c.l.b16 %v598
        %v1450 = vunpack.c.l.b16 %v599
        %v1451 = vunpack.c.l.b16 %v600
        %v1452 = vunpack.c.l.b16 %v601
        %v1453 = vunpack.c.l.b16 %v602
        %v1454 = vunpack.c.l.b16 %v603
        %v1455 = vunpack.c.l.b16 %v604
        %v1456 = vunpack.c.l.b16 %v605
        %v1457 = vunpack.c.l.b16 %v606
        %v1458 = vunpack.c.l.b16 %v607
        %v1459 = vunpack.c.l.b16 %v608
        %v1460 = vunpack.c.l.b16 %v609
        %v1461 = vunpack.c.l.b16 %v610
        %v1462 = vunpack.c.l.b16 %v611
        %v1463 = vunpack.c.l.b16 %v612
        %v1464 = vunpack.c.l.b16 %v613
        %v1465 = vunpack.c.l.b16 %v614
        %v1466 = vunpack.c.l.b16 %v615
        %v1467 = vunpack.c.l.b16 %v616
        %v1468 = vunpack.c.l.b16 %v617
        %v1469 = vunpack.c.l.b16 %v618
        %v1470 = vunpack.c.l.b16 %v619
        %v1471 = vunpack.c.l.b16 %v620
        %v1472 = vunpack.c.l.b16 %v621
        %v1473 = vunpack.c.l.b16 %v622
        %v1474 = vunpack.c.l.b16 %v623
        %v1475 = vunpack.c.l.b16 %v624
        %v1476 = vunpack.c.l.b16 %v625
        %v1477 = vunpack.c.l.b16 %v626
        %v1478 = vunpack.c.l.b16 %v627
        %v1479 = vunpack.c.l.b16 %v628
        %v1480 = vunpack.c.l.b16 %v629
        %v1481 = vunpack.c.l.b16 %v630
        %v1482 = vunpack.c.l.b16 %v631
        %v1483 = vunpack.c.l.b16 %v632
        %v1484 = vunpack.c.l.b16 %v633
        %v1485 = vunpack.c.l.b16 %v634
        %v1486 = vpack.c.b16 %v1087, %v1086
        %v1487 = vpack.c.b16 %v1089, %v1088
        %v1488 = vpack.c.b16 %v1091, %v1090
        %v1489 = vpack.c.b16 %v1093, %v1092
        %v1490 = vpack.c.b16 %v1095, %v1094
        %v1491 = vpack.c.b16 %v1097, %v1096
        %v1492 = vpack.c.b16 %v1099, %v1098
        %v1493 = vpack.c.b16 %v1101, %v1100
        %v1494 = vpack.c.b16 %v1103, %v1102
        %v1495 = vpack.c.b16 %v1105, %v1104
        %v1496 = vpack.c.b16 %v1107, %v1106
        %v1497 = vpack.c.b16 %v1109, %v1108
        %v1498 = vpack.c.b16 %v1111, %v1110
        %v1499 = vpack.c.b16 %v1113, %v1112
        %v1500 = vpack.c.b16 %v1115, %v1114
        %v1501 = vpack.c.b16 %v1117, %v1116
        %v1502 = vpack.c.b16 %v1119, %v1118
        %v1503 = vpack.c.b16 %v1121, %v1120
        %v1504 = vpack.c.b16 %v1123, %v1122
        %v1505 = vpack.c.b16 %v1125, %v1124
        %v1506 = vpack.c.b16 %v1127, %v1126
        %v1507 = vpack.c.b16 %v1129, %v1128
        %v1508 = vpack.c.b16 %v1131, %v1130
        %v1509 = vpack.c.b16 %v1133, %v1132
        %v1510 = vpack.c.b16 %v1135, %v1134
        %v1511 = vpack.c.b16 %v1137, %v1136
        %v1512 = vpack.c.b16 %v1139, %v1138
        %v1513 = vpack.c.b16 %v1141, %v1140
        %v1514 = vpack.c.b16 %v1143, %v1142
        %v1515 = vpack.c.b16 %v1145, %v1144
        %v1516 = vpack.c.b16 %v1147, %v1146
        %v1517 = vpack.c.b16 %v1149, %v1148
        %v1518 = vpack.c.b16 %v1151, %v1150
        %v1519 = vpack.c.b16 %v1153, %v1152
        %v1520 = vpack.c.b16 %v1155, %v1154
        %v1521 = vpack.c.b16 %v1157, %v1156
        %v1522 = vpack.c.b16 %v1159, %v1158
        %v1523 = vpack.c.b16 %v1161, %v1160
        %v1524 = vpack.c.b16 %v1163, %v1162
        %v1525 = vpack.c.b16 %v1165, %v1164
        %v1526 = vpack.c.b16 %v1167, %v1166
        %v1527 = vpack.c.b16 %v1169, %v1168
        %v1528 = vpack.c.b16 %v1171, %v1170
        %v1529 = vpack.c.b16 %v1173, %v1172
        %v1530 = vpack.c.b16 %v1175, %v1174
        %v1531 = vpack.c.b16 %v1177, %v1176
        %v1532 = vpack.c.b16 %v1179, %v1178
        %v1533 = vpack.c.b16 %v1181, %v1180
        %v1534 = vpack.c.b16 %v1183, %v1182
        %v1535 = vpack.c.b16 %v1185, %v1184
        %v1536 = vpack.c.b16 %v1187, %v1186
        %v1537 = vpack.c.b16 %v1189, %v1188
        %v1538 = vpack.c.b16 %v1191, %v1190
        %v1539 = vpack.c.b16 %v1193, %v1192
        %v1540 = vpack.c.b16 %v1195, %v1194
        %v1541 = vpack.c.b16 %v1197, %v1196
        %v1542 = vpack.c.b16 %v1199, %v1198
        %v1543 = vpack.c.b16 %v1201, %v1200
        %v1544 = vpack.c.b16 %v1203, %v1202
        %v1545 = vpack.c.b16 %v1205, %v1204
        %v1546 = vpack.c.b16 %v1207, %v1206
        %v1547 = vpack.c.b16 %v1209, %v1208
        %v1548 = vpack.c.b16 %v1211, %v1210
        %v1549 = vpack.c.b16 %v1213, %v1212
        %v1550 = vpack.c.b16 %v1215, %v1214
        %v1551 = vpack.c.b16 %v1217, %v1216
        %v1552 = vpack.c.b16 %v1219, %v1218
        %v1553 = vpack.c.b16 %v1221, %v1220
        %v1554 = vpack.c.b16 %v1223, %v1222
        %v1555 = vpack.c.b16 %v1225, %v1224
        %v1556 = vpack.c.b16 %v1227, %v1226
        %v1557 = vpack.c.b16 %v1229, %v1228
        %v1558 = vpack.c.b16 %v1231, %v1230
        %v1559 = vpack.c.b16 %v1233, %v1232
        %v1560 = vpack.c.b16 %v1235, %v1234
        %v1561 = vpack.c.b16 %v1237, %v1236
        %v1562 = vpack.c.b16 %v1239, %v1238
        %v1563 = vpack.c.b16 %v1241, %v1240
        %v1564 = vpack.c.b16 %v1243, %v1242
        %v1565 = vpack.c.b16 %v1245, %v1244
        %v1566 = vpack.c.b16 %v1247, %v1246
        %v1567 = vpack.c.b16 %v1249, %v1248
        %v1568 = vpack.c.b16 %v1251, %v1250
        %v1569 = vpack.c.b16 %v1253, %v1252
        %v1570 = vpack.c.b16 %v1255, %v1254
        %v1571 = vpack.c.b16 %v1257, %v1256
        %v1572 = vpack.c.b16 %v1259, %v1258
        %v1573 = vpack.c.b16 %v1261, %v1260
        %v1574 = vpack.c.b16 %v1263, %v1262
        %v1575 = vpack.c.b16 %v1265, %v1264
        %v1576 = vpack.c.b16 %v1267, %v1266
        %v1577 = vpack.c.b16 %v1269, %v1268
        %v1578 = vpack.c.b16 %v1271, %v1270
        %v1579 = vpack.c.b16 %v1273, %v1272
        %v1580 = vpack.c.b16 %v1275, %v1274
        %v1581 = vpack.c.b16 %v1277, %v1276
        %v1582 = vpack.c.b16 %v1279, %v1278
        %v1583 = vpack.c.b16 %v1281, %v1280
        %v1584 = vpack.c.b16 %v1283, %v1282
        %v1585 = vpack.c.b16 %v1285, %v1284
        %v1586 = vpack.c.b16 %v1287, %v1286
        %v1587 = vpack.c.b16 %v1289, %v1288
        %v1588 = vpack.c.b16 %v1291, %v1290
        %v1589 = vpack.c.b16 %v1293, %v1292
        %v1590 = vpack.c.b16 %v1295, %v1294
        %v1591 = vpack.c.b16 %v1297, %v1296
        %v1592 = vpack.c.b16 %v1299, %v1298
        %v1593 = vpack.c.b16 %v1301, %v1300
        %v1594 = vpack.c.b16 %v1303, %v1302
        %v1595 = vpack.c.b16 %v1305, %v1304
        %v1596 = vpack.c.b16 %v1307, %v1306
        %v1597 = vpack.c.b16 %v1309, %v1308
        %v1598 = vpack.c.b16 %v1311, %v1310
        %v1599 = vpack.c.b16 %v1313, %v1312
        %v1600 = vpack.c.b16 %v1315, %v1314
        %v1601 = vpack.c.b16 %v1317, %v1316
        %v1602 = vpack.c.b16 %v1319, %v1318
        %v1603 = vpack.c.b16 %v1321, %v1320
        %v1604 = vpack.c.b16 %v1323, %v1322
        %v1605 = vpack.c.b16 %v1325, %v1324
        %v1606 = vpack.c.b16 %v1327, %v1326
        %v1607 = vpack.c.b16 %v1329, %v1328
        %v1608 = vpack.c.b16 %v1331, %v1330
        %v1609 = vpack.c.b16 %v1333, %v1332
        %v1610 = vpack.c.b16 %v1335, %v1334
        %v1611 = vpack.c.b16 %v1337, %v1336
        %v1612 = vpack.c.b16 %v1339, %v1338
        %v1613 = vpack.c.b16 %v1341, %v1340
        %v1614 = vpack.c.b16 %v1343, %v1342
        %v1615 = vpack.c.b16 %v1345, %v1344
        %v1616 = vpack.c.b16 %v1347, %v1346
        %v1617 = vpack.c.b16 %v1349, %v1348
        %v1618 = vpack.c.b16 %v1351, %v1350
        %v1619 = vpack.c.b16 %v1353, %v1352
        %v1620 = vpack.c.b16 %v1355, %v1354
        %v1621 = vpack.c.b16 %v1357, %v1356
        %v1622 = vpack.c.b16 %v1359, %v1358
        %v1623 = vpack.c.b16 %v1361, %v1360
        %v1624 = vpack.c.b16 %v1363, %v1362
        %v1625 = vpack.c.b16 %v1365, %v1364
        %v1626 = vpack.c.b16 %v1367, %v1366
        %v1627 = vpack.c.b16 %v1369, %v1368
        %v1628 = vpack.c.b16 %v1371, %v1370
        %v1629 = vpack.c.b16 %v1373, %v1372
        %v1630 = vpack.c.b16 %v1375, %v1374
        %v1631 = vpack.c.b16 %v1377, %v1376
        %v1632 = vpack.c.b16 %v1379, %v1378
        %v1633 = vpack.c.b16 %v1381, %v1380
        %v1634 = vpack.c.b16 %v1383, %v1382
        %v1635 = vpack.c.b16 %v1385, %v1384
        %v1636 = vpack.c.b16 %v1387, %v1386
        %v1637 = vpack.c.b16 %v1389, %v1388
        %v1638 = vpack.c.b16 %v1391, %v1390
        %v1639 = vpack.c.b16 %v1393, %v1392
        %v1640 = vpack.c.b16 %v1395, %v1394
        %v1641 = vpack.c.b16 %v1397, %v1396
        %v1642 = vpack.c.b16 %v1399, %v1398
        %v1643 = vpack.c.b16 %v1401, %v1400
        %v1644 = vpack.c.b16 %v1403, %v1402
        %v1645 = vpack.c.b16 %v1405, %v1404
        %v1646 = vpack.c.b16 %v1407, %v1406
        %v1647 = vpack.c.b16 %v1409, %v1408
        %v1648 = vpack.c.b16 %v1411, %v1410
        %v1649 = vpack.c.b16 %v1413, %v1412
        %v1650 = vpack.c.b16 %v1415, %v1414
        %v1651 = vpack.c.b16 %v1417, %v1416
        %v1652 = vpack.c.b16 %v1419, %v1418
        %v1653 = vpack.c.b16 %v1421, %v1420
        %v1654 = vpack.c.b16 %v1423, %v1422
        %v1655 = vpack.c.b16 %v1425, %v1424
        %v1656 = vpack.c.b16 %v1427, %v1426
        %v1657 = vpack.c.b16 %v1429, %v1428
        %v1658 = vpack.c.b16 %v1431, %v1430
        %v1659 = vpack.c.b16 %v1433, %v1432
        %v1660 = vpack.c.b16 %v1435, %v1434
        %v1661 = vpack.c.b16 %v1437, %v1436
        %v1662 = vpack.c.b16 %v1439, %v1438
        %v1663 = vpack.c.b16 %v1441, %v1440
        %v1664 = vpack.c.b16 %v1443, %v1442
        %v1665 = vpack.c.b16 %v1445, %v1444
        %v1666 = vpack.c.b16 %v1447, %v1446
        %v1667 = vpack.c.b16 %v1449, %v1448
        %v1668 = vpack.c.b16 %v1451, %v1450
        %v1669 = vpack.c.b16 %v1453, %v1452
        %v1670 = vpack.c.b16 %v1455, %v1454
        %v1671 = vpack.c.b16 %v1457, %v1456
        %v1672 = vpack.c.b16 %v1459, %v1458
        %v1673 = vpack.c.b16 %v1461, %v1460
        %v1674 = vpack.c.b16 %v1463, %v1462
        %v1675 = vpack.c.b16 %v1465, %v1464
        %v1676 = vpack.c.b16 %v1467, %v1466
        %v1677 = vpack.c.b16 %v1469, %v1468
        %v1678 = vpack.c.b16 %v1471, %v1470
        %v1679 = vpack.c.b16 %v1473, %v1472
        %v1680 = vpack.c.b16 %v1475, %v1474
        %v1681 = vpack.c.b16 %v1477, %v1476
        %v1682 = vpack.c.b16 %v1479, %v1478
        %v1683 = vpack.c.b16 %v1481, %v1480
        %v1684 = vpack.c.b16 %v1483, %v1482
        %v1685 = vpack.c.b16 %v1485, %v1484
        %1886 = vmatprep.subr.bf16.mxu0 0
        %1887 = vmatpush1.bf16.msra.mxu0 %v1486
        %1888 = vmatprep.subr.bf16.mxu0 0
        %1889 = vmatpush1.bf16.msra.mxu0 %v1487
        %1890 = vmatprep.subr.bf16.mxu0 0
        %1891 = vmatpush1.bf16.msra.mxu0 %v1488
        %1892 = vmatprep.subr.bf16.mxu0 0
        %1893 = vmatpush1.bf16.msra.mxu0 %v1489
        %1894 = vmatprep.subr.bf16.mxu0 0
        %1895 = vmatpush1.bf16.msra.mxu0 %v1490
        %1896 = vmatprep.subr.bf16.mxu0 0
        %1897 = vmatpush1.bf16.msra.mxu0 %v1491
        %1898 = vmatprep.subr.bf16.mxu0 0
        %1899 = vmatpush1.bf16.msra.mxu0 %v1492
        %1900 = vmatprep.subr.bf16.mxu0 0
        %1901 = vmatpush1.bf16.msra.mxu0 %v1493
        %1902 = vmatprep.subr.bf16.mxu0 0
        %1903 = vmatpush1.bf16.msra.mxu0 %v1494
        %1904 = vmatprep.subr.bf16.mxu0 0
        %1905 = vmatpush1.bf16.msra.mxu0 %v1495
        %1906 = vmatprep.subr.bf16.mxu0 0
        %1907 = vmatpush1.bf16.msra.mxu0 %v1496
        %1908 = vmatprep.subr.bf16.mxu0 0
        %1909 = vmatpush1.bf16.msra.mxu0 %v1497
        %1910 = vmatprep.subr.bf16.mxu0 0
        %1911 = vmatpush1.bf16.msra.mxu0 %v1498
        %1912 = vmatprep.subr.bf16.mxu0 0
        %1913 = vmatpush1.bf16.msra.mxu0 %v1499
        %1914 = vmatprep.subr.bf16.mxu0 0
        %1915 = vmatpush1.bf16.msra.mxu0 %v1500
        %1916 = vmatprep.subr.bf16.mxu0 0
        %1917 = vmatpush1.bf16.msra.mxu0 %v1501
        %1918 = vmatprep.mubr.bf16.mxu0 %v661
        %1919 = vmatmul.mubr.bf16.gmra.mrb[0].mxu0 %v660
        %v1920 = vpop.f32.mrb[0].mxu0
        %v1921 = vadd.f32 0.0, %v1920
        %v1922 = vpop.f32.mrb[0].mxu0
        %v1923 = vpop.f32.mrb[0].mxu0
        %v1924 = vpop.f32.mrb[0].mxu0
        %1925 = vdwg.mxu0
        %1926 = vmatprep.subr.bf16.mxu0 0
        %1927 = vmatpush1.bf16.msra.mxu0 %v1502
        %1928 = vmatprep.subr.bf16.mxu0 0
        %1929 = vmatpush1.bf16.msra.mxu0 %v1503
        %1930 = vmatprep.subr.bf16.mxu0 0
        %1931 = vmatpush1.bf16.msra.mxu0 %v1504
        %1932 = vmatprep.subr.bf16.mxu0 0
        %1933 = vmatpush1.bf16.msra.mxu0 %v1505
        %1934 = vmatprep.subr.bf16.mxu0 0
        %1935 = vmatpush1.bf16.msra.mxu0 %v1506
        %1936 = vmatprep.subr.bf16.mxu0 0
        %1937 = vmatpush1.bf16.msra.mxu0 %v1507
        %1938 = vmatprep.subr.bf16.mxu0 0
        %1939 = vmatpush1.bf16.msra.mxu0 %v1508
        %1940 = vmatprep.subr.bf16.mxu0 0
        %1941 = vmatpush1.bf16.msra.mxu0 %v1509
        %1942 = vmatprep.subr.bf16.mxu0 0
        %1943 = vmatpush1.bf16.msra.mxu0 %v1510
        %1944 = vmatprep.subr.bf16.mxu0 0
        %1945 = vmatpush1.bf16.msra.mxu0 %v1511
        %1946 = vmatprep.subr.bf16.mxu0 0
        %1947 = vmatpush1.bf16.msra.mxu0 %v1512
        %1948 = vmatprep.subr.bf16.mxu0 0
        %1949 = vmatpush1.bf16.msra.mxu0 %v1513
        %1950 = vmatprep.subr.bf16.mxu0 0
        %1951 = vmatpush1.bf16.msra.mxu0 %v1514
        %1952 = vmatprep.subr.bf16.mxu0 0
        %1953 = vmatpush1.bf16.msra.mxu0 %v1515
        %1954 = vmatprep.subr.bf16.mxu0 0
        %1955 = vmatpush1.bf16.msra.mxu0 %v1516
        %1956 = vmatprep.subr.bf16.mxu0 0
        %1957 = vmatpush1.bf16.msra.mxu0 %v1517
        %1958 = vmatprep.mubr.bf16.mxu0 %v663
        %1959 = vmatmul.mubr.bf16.gmra.mrb[0].mxu0 %v662
        %v1960 = vpop.f32.mrb[0].mxu0
        %v1961 = vadd.f32 %v1921, %v1960
        %v1962 = vpop.f32.mrb[0].mxu0
        %v1963 = vpop.f32.mrb[0].mxu0
        %v1964 = vpop.f32.mrb[0].mxu0
        %1965 = vdwg.mxu0
        %1966 = vmatprep.subr.bf16.mxu0 0
        %1967 = vmatpush1.bf16.msra.mxu0 %v1518
        %1968 = vmatprep.subr.bf16.mxu0 0
        %1969 = vmatpush1.bf16.msra.mxu0 %v1519
        %1970 = vmatprep.subr.bf16.mxu0 0
        %1971 = vmatpush1.bf16.msra.mxu0 %v1520
        %1972 = vmatprep.subr.bf16.mxu0 0
        %1973 = vmatpush1.bf16.msra.mxu0 %v1521
        %1974 = vmatprep.subr.bf16.mxu0 0
        %1975 = vmatpush1.bf16.msra.mxu0 %v1522
        %1976 = vmatprep.subr.bf16.mxu0 0
        %1977 = vmatpush1.bf16.msra.mxu0 %v1523
        %1978 = vmatprep.subr.bf16.mxu0 0
        %1979 = vmatpush1.bf16.msra.mxu0 %v1524
        %1980 = vmatprep.subr.bf16.mxu0 0
        %1981 = vmatpush1.bf16.msra.mxu0 %v1525
        %1982 = vmatprep.subr.bf16.mxu0 0
        %1983 = vmatpush1.bf16.msra.mxu0 %v1526
        %1984 = vmatprep.subr.bf16.mxu0 0
        %1985 = vmatpush1.bf16.msra.mxu0 %v1527
        %1986 = vmatprep.subr.bf16.mxu0 0
        %1987 = vmatpush1.bf16.msra.mxu0 %v1528
        %1988 = vmatprep.subr.bf16.mxu0 0
        %1989 = vmatpush1.bf16.msra.mxu0 %v1529
        %1990 = vmatprep.subr.bf16.mxu0 0
        %1991 = vmatpush1.bf16.msra.mxu0 %v1530
        %1992 = vmatprep.subr.bf16.mxu0 0
        %1993 = vmatpush1.bf16.msra.mxu0 %v1531
        %1994 = vmatprep.subr.bf16.mxu0 0
        %1995 = vmatpush1.bf16.msra.mxu0 %v1532
        %1996 = vmatprep.subr.bf16.mxu0 0
        %1997 = vmatpush1.bf16.msra.mxu0 %v1533
        %1998 = vmatprep.mubr.bf16.mxu0 %v665
        %1999 = vmatmul.mubr.bf16.gmra.mrb[0].mxu0 %v664
        %v2000 = vpop.f32.mrb[0].mxu0
        %v2001 = vadd.f32 %v1961, %v2000
        %v2002 = vpop.f32.mrb[0].mxu0
        %v2003 = vpop.f32.mrb[0].mxu0
        %v2004 = vpop.f32.mrb[0].mxu0
        %2005 = vdwg.mxu0
        %2006 = vmatprep.subr.bf16.mxu0 0
        %2007 = vmatpush1.bf16.msra.mxu0 %v1534
        %2008 = vmatprep.subr.bf16.mxu0 0
        %2009 = vmatpush1.bf16.msra.mxu0 %v1535
        %2010 = vmatprep.subr.bf16.mxu0 0
        %2011 = vmatpush1.bf16.msra.mxu0 %v1536
        %2012 = vmatprep.subr.bf16.mxu0 0
        %2013 = vmatpush1.bf16.msra.mxu0 %v1537
        %2014 = vmatprep.subr.bf16.mxu0 0
        %2015 = vmatpush1.bf16.msra.mxu0 %v1538
        %2016 = vmatprep.subr.bf16.mxu0 0
        %2017 = vmatpush1.bf16.msra.mxu0 %v1539
        %2018 = vmatprep.subr.bf16.mxu0 0
        %2019 = vmatpush1.bf16.msra.mxu0 %v1540
        %2020 = vmatprep.subr.bf16.mxu0 0
        %2021 = vmatpush1.bf16.msra.mxu0 %v1541
        %2022 = vmatprep.subr.bf16.mxu0 0
        %2023 = vmatpush1.bf16.msra.mxu0 %v1542
        %2024 = vmatprep.subr.bf16.mxu0 0
        %2025 = vmatpush1.bf16.msra.mxu0 %v1543
        %2026 = vmatprep.subr.bf16.mxu0 0
        %2027 = vmatpush1.bf16.msra.mxu0 %v1544
        %2028 = vmatprep.subr.bf16.mxu0 0
        %2029 = vmatpush1.bf16.msra.mxu0 %v1545
        %2030 = vmatprep.subr.bf16.mxu0 0
        %2031 = vmatpush1.bf16.msra.mxu0 %v1546
        %2032 = vmatprep.subr.bf16.mxu0 0
        %2033 = vmatpush1.bf16.msra.mxu0 %v1547
        %2034 = vmatprep.subr.bf16.mxu0 0
        %2035 = vmatpush1.bf16.msra.mxu0 %v1548
        %2036 = vmatprep.subr.bf16.mxu0 0
        %2037 = vmatpush1.bf16.msra.mxu0 %v1549
        %2038 = vmatprep.mubr.bf16.mxu0 %v667
        %2039 = vmatmul.mubr.bf16.gmra.mrb[0].mxu0 %v666
        %v2040 = vpop.f32.mrb[0].mxu0
        %v2041 = vadd.f32 %v2001, %v2040
        %v2042 = vpop.f32.mrb[0].mxu0
        %v2043 = vpop.f32.mrb[0].mxu0
        %v2044 = vpop.f32.mrb[0].mxu0
        %2045 = vdwg.mxu0
        %2046 = vmatprep.subr.bf16.mxu0 0
        %2047 = vmatpush1.bf16.msra.mxu0 %v1550
        %2048 = vmatprep.subr.bf16.mxu0 0
        %2049 = vmatpush1.bf16.msra.mxu0 %v1551
        %2050 = vmatprep.subr.bf16.mxu0 0
        %2051 = vmatpush1.bf16.msra.mxu0 %v1552
        %2052 = vmatprep.subr.bf16.mxu0 0
        %2053 = vmatpush1.bf16.msra.mxu0 %v1553
        %2054 = vmatprep.subr.bf16.mxu0 0
        %2055 = vmatpush1.bf16.msra.mxu0 %v1554
        %2056 = vmatprep.subr.bf16.mxu0 0
        %2057 = vmatpush1.bf16.msra.mxu0 %v1555
        %2058 = vmatprep.subr.bf16.mxu0 0
        %2059 = vmatpush1.bf16.msra.mxu0 %v1556
        %2060 = vmatprep.subr.bf16.mxu0 0
        %2061 = vmatpush1.bf16.msra.mxu0 %v1557
        %2062 = vmatprep.subr.bf16.mxu0 0
        %2063 = vmatpush1.bf16.msra.mxu0 %v1558
        %2064 = vmatprep.subr.bf16.mxu0 0
        %2065 = vmatpush1.bf16.msra.mxu0 %v1559
        %2066 = vmatprep.subr.bf16.mxu0 0
        %2067 = vmatpush1.bf16.msra.mxu0 %v1560
        %2068 = vmatprep.subr.bf16.mxu0 0
        %2069 = vmatpush1.bf16.msra.mxu0 %v1561
        %2070 = vmatprep.subr.bf16.mxu0 0
        %2071 = vmatpush1.bf16.msra.mxu0 %v1562
        %2072 = vmatprep.subr.bf16.mxu0 0
        %2073 = vmatpush1.bf16.msra.mxu0 %v1563
        %2074 = vmatprep.subr.bf16.mxu0 0
        %2075 = vmatpush1.bf16.msra.mxu0 %v1564
        %2076 = vmatprep.subr.bf16.mxu0 0
        %2077 = vmatpush1.bf16.msra.mxu0 %v1565
        %2078 = vmatprep.mubr.bf16.mxu0 %v669
        %2079 = vmatmul.mubr.bf16.gmra.mrb[0].mxu0 %v668
        %v2080 = vpop.f32.mrb[0].mxu0
        %v2081 = vadd.f32 %v2041, %v2080
        %v2082 = vpop.f32.mrb[0].mxu0
        %v2083 = vpop.f32.mrb[0].mxu0
        %v2084 = vpop.f32.mrb[0].mxu0
        %2085 = vdwg.mxu0
        %2086 = vmatprep.subr.bf16.mxu0 0
        %2087 = vmatpush1.bf16.msra.mxu0 %v1566
        %2088 = vmatprep.subr.bf16.mxu0 0
        %2089 = vmatpush1.bf16.msra.mxu0 %v1567
        %2090 = vmatprep.subr.bf16.mxu0 0
        %2091 = vmatpush1.bf16.msra.mxu0 %v1568
        %2092 = vmatprep.subr.bf16.mxu0 0
        %2093 = vmatpush1.bf16.msra.mxu0 %v1569
        %2094 = vmatprep.subr.bf16.mxu0 0
        %2095 = vmatpush1.bf16.msra.mxu0 %v1570
        %2096 = vmatprep.subr.bf16.mxu0 0
        %2097 = vmatpush1.bf16.msra.mxu0 %v1571
        %2098 = vmatprep.subr.bf16.mxu0 0
        %2099 = vmatpush1.bf16.msra.mxu0 %v1572
        %2100 = vmatprep.subr.bf16.mxu0 0
        %2101 = vmatpush1.bf16.msra.mxu0 %v1573
        %2102 = vmatprep.subr.bf16.mxu0 0
        %2103 = vmatpush1.bf16.msra.mxu0 %v1574
        %2104 = vmatprep.subr.bf16.mxu0 0
        %2105 = vmatpush1.bf16.msra.mxu0 %v1575
        %2106 = vmatprep.subr.bf16.mxu0 0
        %2107 = vmatpush1.bf16.msra.mxu0 %v1576
        %2108 = vmatprep.subr.bf16.mxu0 0
        %2109 = vmatpush1.bf16.msra.mxu0 %v1577
        %2110 = vmatprep.subr.bf16.mxu0 0
        %2111 = vmatpush1.bf16.msra.mxu0 %v1578
        %2112 = vmatprep.subr.bf16.mxu0 0
        %2113 = vmatpush1.bf16.msra.mxu0 %v1579
        %2114 = vmatprep.subr.bf16.mxu0 0
        %2115 = vmatpush1.bf16.msra.mxu0 %v1580
        %2116 = vmatprep.subr.bf16.mxu0 0
        %2117 = vmatpush1.bf16.msra.mxu0 %v1581
        %2118 = vmatprep.mubr.bf16.mxu0 %v671
        %2119 = vmatmul.mubr.bf16.gmra.mrb[0].mxu0 %v670
        %v2120 = vpop.f32.mrb[0].mxu0
        %v2121 = vadd.f32 %v2081, %v2120
        %v2122 = vpop.f32.mrb[0].mxu0
        %v2123 = vpop.f32.mrb[0].mxu0
        %v2124 = vpop.f32.mrb[0].mxu0
        %2125 = vdwg.mxu0
        %2126 = vmatprep.subr.bf16.mxu0 0
        %2127 = vmatpush1.bf16.msra.mxu0 %v1582
        %2128 = vmatprep.subr.bf16.mxu0 0
        %2129 = vmatpush1.bf16.msra.mxu0 %v1583
        %2130 = vmatprep.subr.bf16.mxu0 0
        %2131 = vmatpush1.bf16.msra.mxu0 %v1584
        %2132 = vmatprep.subr.bf16.mxu0 0
        %2133 = vmatpush1.bf16.msra.mxu0 %v1585
        %2134 = vmatprep.subr.bf16.mxu0 0
        %2135 = vmatpush1.bf16.msra.mxu0 %v1586
        %2136 = vmatprep.subr.bf16.mxu0 0
        %2137 = vmatpush1.bf16.msra.mxu0 %v1587
        %2138 = vmatprep.subr.bf16.mxu0 0
        %2139 = vmatpush1.bf16.msra.mxu0 %v1588
        %2140 = vmatprep.subr.bf16.mxu0 0
        %2141 = vmatpush1.bf16.msra.mxu0 %v1589
        %2142 = vmatprep.subr.bf16.mxu0 0
        %2143 = vmatpush1.bf16.msra.mxu0 %v1590
        %2144 = vmatprep.subr.bf16.mxu0 0
        %2145 = vmatpush1.bf16.msra.mxu0 %v1591
        %2146 = vmatprep.subr.bf16.mxu0 0
        %2147 = vmatpush1.bf16.msra.mxu0 %v1592
        %2148 = vmatprep.subr.bf16.mxu0 0
        %2149 = vmatpush1.bf16.msra.mxu0 %v1593
        %2150 = vmatprep.subr.bf16.mxu0 0
        %2151 = vmatpush1.bf16.msra.mxu0 %v1594
        %2152 = vmatprep.subr.bf16.mxu0 0
        %2153 = vmatpush1.bf16.msra.mxu0 %v1595
        %2154 = vmatprep.subr.bf16.mxu0 0
        %2155 = vmatpush1.bf16.msra.mxu0 %v1596
        %2156 = vmatprep.subr.bf16.mxu0 0
        %2157 = vmatpush1.bf16.msra.mxu0 %v1597
        %2158 = vmatprep.mubr.bf16.mxu0 %v673
        %2159 = vmatmul.mubr.bf16.gmra.mrb[0].mxu0 %v672
        %v2160 = vpop.f32.mrb[0].mxu0
        %v2161 = vadd.f32 %v2121, %v2160
        %v2162 = vpop.f32.mrb[0].mxu0
        %v2163 = vpop.f32.mrb[0].mxu0
        %v2164 = vpop.f32.mrb[0].mxu0
        %2165 = vdwg.mxu0
        %2166 = vmatprep.subr.bf16.mxu0 0
        %2167 = vmatpush1.bf16.msra.mxu0 %v1598
        %2168 = vmatprep.subr.bf16.mxu0 0
        %2169 = vmatpush1.bf16.msra.mxu0 %v1599
        %2170 = vmatprep.subr.bf16.mxu0 0
        %2171 = vmatpush1.bf16.msra.mxu0 %v1600
        %2172 = vmatprep.subr.bf16.mxu0 0
        %2173 = vmatpush1.bf16.msra.mxu0 %v1601
        %2174 = vmatprep.subr.bf16.mxu0 0
        %2175 = vmatpush1.bf16.msra.mxu0 %v1602
        %2176 = vmatprep.subr.bf16.mxu0 0
        %2177 = vmatpush1.bf16.msra.mxu0 %v1603
        %2178 = vmatprep.subr.bf16.mxu0 0
        %2179 = vmatpush1.bf16.msra.mxu0 %v1604
        %2180 = vmatprep.subr.bf16.mxu0 0
        %2181 = vmatpush1.bf16.msra.mxu0 %v1605
        %2182 = vmatprep.subr.bf16.mxu0 0
        %2183 = vmatpush1.bf16.msra.mxu0 %v1606
        %2184 = vmatprep.subr.bf16.mxu0 0
        %2185 = vmatpush1.bf16.msra.mxu0 %v1607
        %2186 = vmatprep.subr.bf16.mxu0 0
        %2187 = vmatpush1.bf16.msra.mxu0 %v1608
        %2188 = vmatprep.subr.bf16.mxu0 0
        %2189 = vmatpush1.bf16.msra.mxu0 %v1609
        %2190 = vmatprep.subr.bf16.mxu0 0
        %2191 = vmatpush1.bf16.msra.mxu0 %v1610
        %2192 = vmatprep.subr.bf16.mxu0 0
        %2193 = vmatpush1.bf16.msra.mxu0 %v1611
        %2194 = vmatprep.subr.bf16.mxu0 0
        %2195 = vmatpush1.bf16.msra.mxu0 %v1612
        %2196 = vmatprep.subr.bf16.mxu0 0
        %2197 = vmatpush1.bf16.msra.mxu0 %v1613
        %2198 = vmatprep.mubr.bf16.mxu0 %v675
        %2199 = vmatmul.mubr.bf16.gmra.mrb[0].mxu0 %v674
        %v2200 = vpop.f32.mrb[0].mxu0
        %v2201 = vadd.f32 %v2161, %v2200
        %v2202 = vpop.f32.mrb[0].mxu0
        %v2203 = vpop.f32.mrb[0].mxu0
        %v2204 = vpop.f32.mrb[0].mxu0
        %2205 = vdwg.mxu0
        %2206 = vmatprep.subr.bf16.mxu0 0
        %2207 = vmatpush1.bf16.msra.mxu0 %v1614
        %2208 = vmatprep.subr.bf16.mxu0 0
        %2209 = vmatpush1.bf16.msra.mxu0 %v1615
        %2210 = vmatprep.subr.bf16.mxu0 0
        %2211 = vmatpush1.bf16.msra.mxu0 %v1616
        %2212 = vmatprep.subr.bf16.mxu0 0
        %2213 = vmatpush1.bf16.msra.mxu0 %v1617
        %2214 = vmatprep.subr.bf16.mxu0 0
        %2215 = vmatpush1.bf16.msra.mxu0 %v1618
        %2216 = vmatprep.subr.bf16.mxu0 0
        %2217 = vmatpush1.bf16.msra.mxu0 %v1619
        %2218 = vmatprep.subr.bf16.mxu0 0
        %2219 = vmatpush1.bf16.msra.mxu0 %v1620
        %2220 = vmatprep.subr.bf16.mxu0 0
        %2221 = vmatpush1.bf16.msra.mxu0 %v1621
        %2222 = vmatprep.subr.bf16.mxu0 0
        %2223 = vmatpush1.bf16.msra.mxu0 %v1622
        %2224 = vmatprep.subr.bf16.mxu0 0
        %2225 = vmatpush1.bf16.msra.mxu0 %v1623
        %2226 = vmatprep.subr.bf16.mxu0 0
        %2227 = vmatpush1.bf16.msra.mxu0 %v1624
        %2228 = vmatprep.subr.bf16.mxu0 0
        %2229 = vmatpush1.bf16.msra.mxu0 %v1625
        %2230 = vmatprep.subr.bf16.mxu0 0
        %2231 = vmatpush1.bf16.msra.mxu0 %v1626
        %2232 = vmatprep.subr.bf16.mxu0 0
        %2233 = vmatpush1.bf16.msra.mxu0 %v1627
        %2234 = vmatprep.subr.bf16.mxu0 0
        %2235 = vmatpush1.bf16.msra.mxu0 %v1628
        %2236 = vmatprep.subr.bf16.mxu0 0
        %2237 = vmatpush1.bf16.msra.mxu0 %v1629
        %2238 = vmatprep.mubr.bf16.mxu0 %v677
        %2239 = vmatmul.mubr.bf16.gmra.mrb[0].mxu0 %v676
        %v2240 = vpop.f32.mrb[0].mxu0
        %v2241 = vadd.f32 %v2201, %v2240
        %v2242 = vpop.f32.mrb[0].mxu0
        %v2243 = vpop.f32.mrb[0].mxu0
        %v2244 = vpop.f32.mrb[0].mxu0
        %2245 = vdwg.mxu0
        %2246 = vmatprep.subr.bf16.mxu0 0
        %2247 = vmatpush1.bf16.msra.mxu0 %v1630
        %2248 = vmatprep.subr.bf16.mxu0 0
        %2249 = vmatpush1.bf16.msra.mxu0 %v1631
        %2250 = vmatprep.subr.bf16.mxu0 0
        %2251 = vmatpush1.bf16.msra.mxu0 %v1632
        %2252 = vmatprep.subr.bf16.mxu0 0
        %2253 = vmatpush1.bf16.msra.mxu0 %v1633
        %2254 = vmatprep.subr.bf16.mxu0 0
        %2255 = vmatpush1.bf16.msra.mxu0 %v1634
        %2256 = vmatprep.subr.bf16.mxu0 0
        %2257 = vmatpush1.bf16.msra.mxu0 %v1635
        %2258 = vmatprep.subr.bf16.mxu0 0
        %2259 = vmatpush1.bf16.msra.mxu0 %v1636
        %2260 = vmatprep.subr.bf16.mxu0 0
        %2261 = vmatpush1.bf16.msra.mxu0 %v1637
        %2262 = vmatprep.subr.bf16.mxu0 0
        %2263 = vmatpush1.bf16.msra.mxu0 %v1638
        %2264 = vmatprep.subr.bf16.mxu0 0
        %2265 = vmatpush1.bf16.msra.mxu0 %v1639
        %2266 = vmatprep.subr.bf16.mxu0 0
        %2267 = vmatpush1.bf16.msra.mxu0 %v1640
        %2268 = vmatprep.subr.bf16.mxu0 0
        %2269 = vmatpush1.bf16.msra.mxu0 %v1641
        %2270 = vmatprep.subr.bf16.mxu0 0
        %2271 = vmatpush1.bf16.msra.mxu0 %v1642
        %2272 = vmatprep.subr.bf16.mxu0 0
        %2273 = vmatpush1.bf16.msra.mxu0 %v1643
        %2274 = vmatprep.subr.bf16.mxu0 0
        %2275 = vmatpush1.bf16.msra.mxu0 %v1644
        %2276 = vmatprep.subr.bf16.mxu0 0
        %2277 = vmatpush1.bf16.msra.mxu0 %v1645
        %2278 = vmatprep.mubr.bf16.mxu0 %v679
        %2279 = vmatmul.mubr.bf16.gmra.mrb[0].mxu0 %v678
        %v2280 = vpop.f32.mrb[0].mxu0
        %v2281 = vadd.f32 %v2241, %v2280
        %v2282 = vpop.f32.mrb[0].mxu0
        %v2283 = vpop.f32.mrb[0].mxu0
        %v2284 = vpop.f32.mrb[0].mxu0
        %2285 = vdwg.mxu0
        %2286 = vmatprep.subr.bf16.mxu0 0
        %2287 = vmatpush1.bf16.msra.mxu0 %v1646
        %2288 = vmatprep.subr.bf16.mxu0 0
        %2289 = vmatpush1.bf16.msra.mxu0 %v1647
        %2290 = vmatprep.subr.bf16.mxu0 0
        %2291 = vmatpush1.bf16.msra.mxu0 %v1648
        %2292 = vmatprep.subr.bf16.mxu0 0
        %2293 = vmatpush1.bf16.msra.mxu0 %v1649
        %2294 = vmatprep.subr.bf16.mxu0 0
        %2295 = vmatpush1.bf16.msra.mxu0 %v1650
        %2296 = vmatprep.subr.bf16.mxu0 0
        %2297 = vmatpush1.bf16.msra.mxu0 %v1651
        %2298 = vmatprep.subr.bf16.mxu0 0
        %2299 = vmatpush1.bf16.msra.mxu0 %v1652
        %2300 = vmatprep.subr.bf16.mxu0 0
        %2301 = vmatpush1.bf16.msra.mxu0 %v1653
        %2302 = vmatprep.subr.bf16.mxu0 0
        %2303 = vmatpush1.bf16.msra.mxu0 %v1654
        %2304 = vmatprep.subr.bf16.mxu0 0
        %2305 = vmatpush1.bf16.msra.mxu0 %v1655
        %2306 = vmatprep.subr.bf16.mxu0 0
        %2307 = vmatpush1.bf16.msra.mxu0 %v1656
        %2308 = vmatprep.subr.bf16.mxu0 0
        %2309 = vmatpush1.bf16.msra.mxu0 %v1657
        %2310 = vmatprep.subr.bf16.mxu0 0
        %2311 = vmatpush1.bf16.msra.mxu0 %v1658
        %2312 = vmatprep.subr.bf16.mxu0 0
        %2313 = vmatpush1.bf16.msra.mxu0 %v1659
        %2314 = vmatprep.subr.bf16.mxu0 0
        %2315 = vmatpush1.bf16.msra.mxu0 %v1660
        %2316 = vmatprep.subr.bf16.mxu0 0
        %2317 = vmatpush1.bf16.msra.mxu0 %v1661
        %2318 = vmatprep.mubr.bf16.mxu0 %v681
        %2319 = vmatmul.mubr.bf16.gmra.mrb[0].mxu0 %v680
        %v2320 = vpop.f32.mrb[0].mxu0
        %v2321 = vadd.f32 %v2281, %v2320
        %v2322 = vpop.f32.mrb[0].mxu0
        %v2323 = vpop.f32.mrb[0].mxu0
        %v2324 = vpop.f32.mrb[0].mxu0
        %2325 = vdwg.mxu0
        %2326 = vmatprep.subr.bf16.mxu0 0
        %2327 = vmatpush1.bf16.msra.mxu0 %v1662
        %2328 = vmatprep.subr.bf16.mxu0 0
        %2329 = vmatpush1.bf16.msra.mxu0 %v1663
        %2330 = vmatprep.subr.bf16.mxu0 0
        %2331 = vmatpush1.bf16.msra.mxu0 %v1664
        %2332 = vmatprep.subr.bf16.mxu0 0
        %2333 = vmatpush1.bf16.msra.mxu0 %v1665
        %2334 = vmatprep.subr.bf16.mxu0 0
        %2335 = vmatpush1.bf16.msra.mxu0 %v1666
        %2336 = vmatprep.subr.bf16.mxu0 0
        %2337 = vmatpush1.bf16.msra.mxu0 %v1667
        %2338 = vmatprep.subr.bf16.mxu0 0
        %2339 = vmatpush1.bf16.msra.mxu0 %v1668
        %2340 = vmatprep.subr.bf16.mxu0 0
        %2341 = vmatpush1.bf16.msra.mxu0 %v1669
        %2342 = vmatprep.subr.bf16.mxu0 0
        %2343 = vmatpush1.bf16.msra.mxu0 %v1670
        %2344 = vmatprep.subr.bf16.mxu0 0
        %2345 = vmatpush1.bf16.msra.mxu0 %v1671
        %2346 = vmatprep.subr.bf16.mxu0 0
        %2347 = vmatpush1.bf16.msra.mxu0 %v1672
        %2348 = vmatprep.subr.bf16.mxu0 0
        %2349 = vmatpush1.bf16.msra.mxu0 %v1673
        %2350 = vmatprep.subr.bf16.mxu0 0
        %2351 = vmatpush1.bf16.msra.mxu0 %v1674
        %2352 = vmatprep.subr.bf16.mxu0 0
        %2353 = vmatpush1.bf16.msra.mxu0 %v1675
        %2354 = vmatprep.subr.bf16.mxu0 0
        %2355 = vmatpush1.bf16.msra.mxu0 %v1676
        %2356 = vmatprep.subr.bf16.mxu0 0
        %2357 = vmatpush1.bf16.msra.mxu0 %v1677
        %2358 = vmatprep.mubr.bf16.mxu0 %v683
        %2359 = vmatmul.mubr.bf16.gmra.mrb[0].mxu0 %v682
        %v2360 = vpop.f32.mrb[0].mxu0
        %v2361 = vadd.f32 %v2321, %v2360
        %v2362 = vpop.f32.mrb[0].mxu0
        %v2363 = vpop.f32.mrb[0].mxu0
        %v2364 = vpop.f32.mrb[0].mxu0
        %2365 = vdwg.mxu0
        %2366 = vmatprep.subr.bf16.mxu0 0
        %2367 = vmatpush1.bf16.msra.mxu0 %v1678
        %2368 = vmatprep.subr.bf16.mxu0 0
        %2369 = vmatpush1.bf16.msra.mxu0 %v1679
        %2370 = vmatprep.subr.bf16.mxu0 0
        %2371 = vmatpush1.bf16.msra.mxu0 %v1680
        %2372 = vmatprep.subr.bf16.mxu0 0
        %2373 = vmatpush1.bf16.msra.mxu0 %v1681
        %2374 = vmatprep.subr.bf16.mxu0 0
        %2375 = vmatpush1.bf16.msra.mxu0 %v1682
        %2376 = vmatprep.subr.bf16.mxu0 0
        %2377 = vmatpush1.bf16.msra.mxu0 %v1683
        %2378 = vmatprep.subr.bf16.mxu0 0
        %2379 = vmatpush1.bf16.msra.mxu0 %v1684
        %2380 = vmatprep.subr.bf16.mxu0 0
        %2381 = vmatpush1.bf16.msra.mxu0 %v1685
        %2382 = vmatprep.subr.bf16.mxu0 0
        %2383 = vmatpush1.bf16.msra.mxu0 0
        %2384 = vmatprep.subr.bf16.mxu0 0
        %2385 = vmatpush1.bf16.msra.mxu0 0
        %2386 = vmatprep.subr.bf16.mxu0 0
        %2387 = vmatpush1.bf16.msra.mxu0 0
        %2388 = vmatprep.subr.bf16.mxu0 0
        %2389 = vmatpush1.bf16.msra.mxu0 0
        %2390 = vmatprep.subr.bf16.mxu0 0
        %2391 = vmatpush1.bf16.msra.mxu0 0
        %2392 = vmatprep.subr.bf16.mxu0 0
        %2393 = vmatpush1.bf16.msra.mxu0 0
        %2394 = vmatprep.subr.bf16.mxu0 0
        %2395 = vmatpush1.bf16.msra.mxu0 0
        %2396 = vmatprep.subr.bf16.mxu0 0
        %2397 = vmatpush1.bf16.msra.mxu0 0
        %2398 = vmatprep.mubr.bf16.mxu0 0
        %2399 = vmatmul.mubr.bf16.gmra.mrb[0].mxu0 %v684
        %v2400 = vpop.f32.mrb[0].mxu0
        %v2401 = vadd.f32 %v2361, %v2400
        %v2402 = vpop.f32.mrb[0].mxu0
        %v2403 = vpop.f32.mrb[0].mxu0
        %v2404 = vpop.f32.mrb[0].mxu0
        %2405 = vdwg.mxu0
        %v2406 = vadd.f32 %v685, %v2401
        %2407 = vst [vmem:[#allocation2] sm:$0xff] %v2406
        %p2408 = scmp.eq.s32.totalorder %s24, 3
        // Predicated region
        $region49: #{derived_model9_forward.1} parent=31 // pred_check
          %p2409 = pneg %p2408
        $region50: #{derived_model9_forward.1} parent=31 // pred_check_branch
          %2411 = sbr.rel (%p2409) target = $region52
        $region51: #{derived_model9_forward.1} parent=31 // pred_region
          %v2412 = vld [vmem:[#allocation2] sm:$0xff]
          %v2413 = vld [vmem:[#allocation8] sm:$0x1]
          %v2415 = vlaneseq
          %v2416 = vshrl.u32 %v2415, 7
          %v2417 = vsub.s32 0, %v2416
          %v2418 = vrot.slane %v2413, %v2417
          %v2420 = vadd.f32 %v2412, %v2418
          %2421 = vmax.xlane.f32.xlu0 %v2420
          %v2422 = vpop.xlane.xlu0 %2421
          %v2423 = vsub.f32 %v2420, %v2422
          %v2424 = vmul.f32 %v2423, 1.442695
          %v2425 = vpow.pop %v2424
          %2426 = vadd.xlane.f32.xlu0 %v2425
          %v2427 = vpop.xlane.xlu0 %2426
          %v2428 = vlog2.pop %v2427
          %v2429 = vmul.f32 %v2428, 0.6931472
          %v2430 = vsub.f32 %v2423, %v2429
          %2431 = vst [vmem:[#allocation9] sm:$0xff] %v2430
        $region52: #{derived_model9_forward.1} parent=31 // pred_fallthru
          _
        // Predicated region
        $region53: #{derived_model9_forward.1} parent=31 // pred_check
          %p2432 = pneg %p119
        $region54: #{derived_model9_forward.1} parent=31 // pred_check_branch
          %2434 = sbr.rel (%p2432) target = $region56
        $region55: #{derived_model9_forward.1} parent=31 // pred_region
          %s2436 = ssub.s32 128, 128
          %2437 = vsyncadd [#allocation5], %s2436
          %s2438 = smul.addr %s23, 128
          %s2439 = scalar_lea.hbm %s3, %s2438
          %s2441 = sshll.u32 [#allocation9], 4
          %s2442 = int_to_ptr.vmem [resolvable:$true] %s2441
          %2444 = dma.vmem_to_hbm [thread:$0]  %s2442, 128, %s2439, [#allocation5]
        $region56: #{derived_model9_forward.1} parent=31 // pred_fallthru
          _
        // Predicated region
        $region57: #{derived_model9_forward.1} parent=31 // pred_check
          %p2445 = pneg %p119
        $region58: #{derived_model9_forward.1} parent=31 // pred_check_branch
          %2447 = sbr.rel (%p2445) target = $region60
        $region59: #{derived_model9_forward.1} parent=31 // pred_region
          %2448 = dma.done [#allocation5], 128
        $region60: #{derived_model9_forward.1} parent=31 // pred_fallthru
          _
      $region32: #{derived_model9_forward.1} parent=5 // pred_fallthru
        _
      %p2449 = scmp.le.s32.totalorder 2, %s14
      // Predicated region
      $region61: #{derived_model9_forward.1} parent=5 // pred_check
        %p2450 = pneg %p2449
      $region62: #{derived_model9_forward.1} parent=5 // pred_check_branch
        %2452 = sbr.rel (%p2450) target = $region64
      $region63: #{derived_model9_forward.1} parent=5 // pred_region
        %s2453 = ssub.s32 %s14, 2
      $region64: #{derived_model9_forward.1} parent=5 // pred_fallthru
        _
    $region6: #{derived_model9_forward.1} parent=1 // loop_footer
      %s18 = sadd.s32 1, %s14
    $region7: #{derived_model9_forward.1} parent=1 // loop_footer_branch
      %13 = sbr.rel target = $region3
    $region8: #{derived_model9_forward.1} parent=1 // loop_exit
      _
    %2454 = vsyncpa [#allocation4], 1
    %s2455 = scalar_lea.sflag [#allocation4], 1
    %2456 = vsyncpa %s2455, 1
    %2457 = vsyncpa [#allocation7], 1
    %2458 = vsyncpa [#allocation5], 1
    %s2459 = scalar_lea.sflag [#allocation5], 1
    %2460 = vsyncpa %s2459, 1

</llo_original>
